<compile_context>
chip_gen: v5e
topology: v5e:2x2
jax: 0.10.0
libtpu: 0.0.40
codegen_flags: <defaults>
</compile_context>

<pallas_src>
import functools

import jax
import jax.numpy as jnp
from jax.experimental import pallas as pl
from jax.experimental.pallas import tpu as pltpu

_LANE = 128                      # lane width: batch padding / tile granularity
_MAX_TILE_B = 1024               # rows per grid step (lane-dense emb block = 512 KiB f32)
_PALLAS_MIN_BATCH = 1024         # below this the fused-XLA path wins
_VMEM_LIMIT = 32 * 1024 * 1024   # explicit scoped-VMEM limit (OK on v5e/v6e/v7x)


def _round_up(x, m):
    return ((x + m - 1) // m) * m


def _score_kernel(emb_ref, hc_ref, w1bd_ref, w2_ref, o_ref):
    """One batch tile.

    emb:  (TB, L*I)   lane-dense embedding rows
    hc:   (TB, H)     hidden @ W1_hidden.T + bias, precomputed per batch
    w1bd: (L*I, L*H)  block-diagonal embedding half of attn weight (resident)
    w2:   (1, H)      score weight row (resident)
    o:    (L, TB)     lane-dense scores (transposed; wrapper undoes it)
    """
    tb = emb_ref.shape[0]
    hid = w2_ref.shape[1]
    max_len = w1bd_ref.shape[1] // hid

    # Single wide MXU pass: K = L*I, N = L*H (vs L narrow K=I / N=H pushes).
    h = jnp.dot(emb_ref[...], w1bd_ref[...],
                preferred_element_type=jnp.float32)             # (TB, L*H) f32
    h = h.reshape(tb, max_len, hid) + hc_ref[...][:, None, :]   # VPU add (f32)
    t = jnp.tanh(h)                                             # EUP
    s = jnp.sum(t * w2_ref[...].reshape(1, 1, hid), axis=-1)    # VPU mul + XLU reduce -> (TB, L)
    o_ref[...] = s.T.astype(o_ref.dtype)                        # lane-dense (L, TB) store


@functools.partial(jax.jit, static_argnames=("tile_b",))
def _score_pallas(emb, hc, w1bd, w2_row, *, tile_b):
    b_pad, li = emb.shape
    hid = hc.shape[1]
    lh = w1bd.shape[1]
    max_len = lh // hid
    grid = (b_pad // tile_b,)
    return pl.pallas_call(
        _score_kernel,
        out_shape=jax.ShapeDtypeStruct((max_len, b_pad), jnp.float32),
        grid_spec=pltpu.PrefetchScalarGridSpec(
            num_scalar_prefetch=0,
            grid=grid,
            in_specs=[
                # Lane-dense (tile_b, 128) emb stream.  If profiles ever show
                # exposed DMA here, bump to pipeline_mode=pl.Buffered(3).
                pl.BlockSpec((tile_b, li), lambda i: (i, 0)),
                # Per-batch hidden contribution.  (tile_b, 32) blocks lane-pad
                # 4x but hc is only ~20% of traffic; not worth transpose
                # plumbing per the perf review.
                pl.BlockSpec((tile_b, hid), lambda i: (i, 0)),
                # Weights stay resident across the grid.
                pl.BlockSpec((li, lh), lambda i: (0, 0)),
                pl.BlockSpec((1, hid), lambda i: (0, 0)),
            ],
            out_specs=pl.BlockSpec((max_len, tile_b), lambda i: (0, i)),
        ),
        compiler_params=pltpu.CompilerParams(
            dimension_semantics=("parallel",),   # batch tiles shard across v7x's 2 TCs
            vmem_limit_bytes=_VMEM_LIMIT,
        ),
    )(emb, hc, w1bd, w2_row)


def score_forward(hidden, num_embeddings, params, num_mask=None,
                  compute_dtype=jnp.float32, use_pallas=None):
    """JAX/Pallas equivalent of Score.forward.

    hidden:         (B, 1, hidden_size) float32
    num_embeddings: (B, L, input_size)  float32
    num_mask:       (B, L) bool or None
    compute_dtype:  dtype of the streamed emb / block-diag weight (f32 or bf16;
                    MXU accumulation and everything after the matmul stay f32).
    use_pallas:     None -> auto (Pallas only for large B); bool to force.
    returns:        (B, L) float32
    """
    b, max_len, in_sz = num_embeddings.shape
    hid = hidden.shape[2]

    attn_w = params["attn_w"]          # (H, H+I), torch Linear layout
    attn_b = params["attn_b"]          # (H,)
    score_w = params["score_w"]        # (1, H)

    # energy_in features are ordered [hidden | embeddings] -> split the weight.
    w1h_t = attn_w[:, :hid].T          # (H, H)
    w1e_t = attn_w[:, hid:].T          # (I, H)

    # Per-batch hidden contribution (+ bias), computed once: (B, H).  This is
    # what removes the L-fold duplication of `hidden` from HBM traffic.
    hc = (hidden[:, 0, :] @ w1h_t + attn_b[None, :]).astype(jnp.float32)

    if use_pallas is None:
        use_pallas = b >= _PALLAS_MIN_BATCH

    if not use_pallas:
        # Small-batch fast path: the pallas_call fixed cost dominates here and
        # XLA fuses this tiny op for free.
        t = jnp.tanh(num_embeddings.astype(jnp.float32) @ w1e_t + hc[:, None, :])
        score = jnp.einsum("blh,h->bl", t, score_w[0])
    else:
        # Lane-dense stream: (B, L, I) -> (B, L*I); row-major, so the reshape is free.
        emb = num_embeddings.reshape(b, max_len * in_sz).astype(compute_dtype)
        # Block-diagonal weight (L*I, L*H): w1bd[l*I+i, m*H+h] = (l==m)*w1e_t[i,h].
        eye_l = jnp.eye(max_len, dtype=w1e_t.dtype)
        w1bd = jnp.einsum("lm,ih->limh", eye_l, w1e_t).reshape(
            max_len * in_sz, max_len * hid).astype(compute_dtype)
        w2_row = score_w.reshape(1, hid).astype(jnp.float32)

        # Pad batch to a lane multiple (unmasked output stores), cap the tile,
        # and aim for >= 2 balanced grid steps so both v7x TCs get work.
        b_pad = _round_up(b, _LANE)
        if b_pad <= _LANE:
            tile_b = _LANE
        else:
            tile_b = min(_MAX_TILE_B, _round_up(pl.cdiv(b_pad, 2), _LANE))
        b_pad = _round_up(b_pad, tile_b)
        pad = b_pad - b
        if pad:
            emb = jnp.pad(emb, ((0, pad), (0, 0)))
            hc_p = jnp.pad(hc, ((0, pad), (0, 0)))
        else:
            hc_p = hc

        out_t = _score_pallas(emb, hc_p, w1bd, w2_row, tile_b=tile_b)  # (L, b_pad)
        score = out_t[:, :b].T                                         # (B, L)

    if num_mask is not None:
        score = jnp.where(num_mask, jnp.float32(-1e12), score)
    return score


def init_params(key, input_size, hidden_size):
    """Deterministic synthetic parameters matching torch nn.Linear shapes."""
    k1, k2, k3 = jax.random.split(key, 3)
    fan_in_attn = hidden_size + input_size
    bound_attn = 1.0 / jnp.sqrt(fan_in_attn)
    bound_score = 1.0 / jnp.sqrt(hidden_size)
    return {
        # torch: attn.weight (hidden, hidden+input), attn.bias (hidden,)
        "attn_w": jax.random.uniform(
            k1, (hidden_size, fan_in_attn), jnp.float32, -bound_attn, bound_attn
        ),
        "attn_b": jax.random.uniform(
            k2, (hidden_size,), jnp.float32, -bound_attn, bound_attn
        ),
        # torch: score.weight (1, hidden), no bias
        "score_w": jax.random.uniform(
            k3, (1, hidden_size), jnp.float32, -bound_score, bound_score
        ),
    }


if __name__ == "__main__":
    INPUT_SIZE, HIDDEN_SIZE = 16, 32

    key = jax.random.PRNGKey(0)
    kp, kdata = jax.random.split(key, 2)
    params = init_params(kp, INPUT_SIZE, HIDDEN_SIZE)

    def reference(hidden, num_embeddings, num_mask):
        # Pure-JAX reference of the original (concat-based) formulation.
        b, max_len, _ = num_embeddings.shape
        hidden_rep = jnp.broadcast_to(hidden, (b, max_len, HIDDEN_SIZE))
        energy_in = jnp.concatenate([hidden_rep, num_embeddings], axis=2).reshape(
            b * max_len, HIDDEN_SIZE + INPUT_SIZE
        )
        ref = jnp.tanh(energy_in @ params["attn_w"].T + params["attn_b"]) @ params[
            "score_w"
        ].T
        ref = ref.reshape(b, max_len)
        return jnp.where(num_mask, jnp.float32(-1e12), ref)

    ok = True
    # (B=2, L=8): small demo shape, single padded tile, grid=(1,).
    # (B=300, L=8): exercises batch padding to 512 and a 2-step parallel grid.
    for b, max_len in ((2, 8), (300, 8)):
        kh, ke = jax.random.split(jax.random.fold_in(kdata, b), 2)
        hidden = jax.random.normal(kh, (b, 1, HIDDEN_SIZE), jnp.float32)
        num_embeddings = jax.random.normal(ke, (b, max_len, INPUT_SIZE), jnp.float32)
        # deterministic mask: last two positions of each batch row masked out
        num_mask = jnp.broadcast_to(
            jnp.arange(max_len)[None, :] >= (max_len - 2), (b, max_len)
        )

        out = score_forward(hidden, num_embeddings, params, num_mask,
                            use_pallas=True)   # force the Pallas kernel
        jax.block_until_ready(out)

        ref = reference(hidden, num_embeddings, num_mask)
        ok = ok and (out.shape == (b, max_len))
        ok = ok and bool(jnp.allclose(out, ref, atol=1e-4, rtol=1e-4))

    assert ok
    print("KERNEL_OK")
</pallas_src>

<mosaic_0001>
module attributes {stable_mosaic.version = 11 : i64} {
  func.func @_score_kernel(%arg0: i32, %arg1: memref<128x128xf32, #tpu.memory_space<vmem>>, %arg2: memref<128x32xf32, #tpu.memory_space<vmem>>, %arg3: memref<128x256xf32, #tpu.memory_space<vmem>>, %arg4: memref<1x32xf32, #tpu.memory_space<vmem>>, %arg5: memref<8x128xf32, #tpu.memory_space<vmem>>) attributes {dimension_semantics = [#tpu.dimension_semantics<parallel>], iteration_bounds = array<i64: 1>, scalar_prefetch = 0 : i64, scratch_operands = 0 : i64, tpu.core_type = #tpu.core_type<tc>, window_params = [{transform_indices = @transform_0, window_bounds = array<i64: 128, 128>}, {transform_indices = @transform_1, window_bounds = array<i64: 128, 32>}, {pipeline_mode = #tpu.pipeline_mode<synchronous>, transform_indices = @transform_2, window_bounds = array<i64: 128, 256>}, {pipeline_mode = #tpu.pipeline_mode<synchronous>, transform_indices = @transform_3, window_bounds = array<i64: 1, 32>}, {transform_indices = @transform_4, window_bounds = array<i64: 8, 128>}]} {
    %c0 = arith.constant 0 : index
    %c0_0 = arith.constant 0 : index
    %0 = vector.load %arg1[%c0, %c0_0] : memref<128x128xf32, #tpu.memory_space<vmem>>, vector<128x128xf32>
    %c0_1 = arith.constant 0 : index
    %c0_2 = arith.constant 0 : index
    %1 = vector.load %arg3[%c0_1, %c0_2] : memref<128x256xf32, #tpu.memory_space<vmem>>, vector<128x256xf32>
    %cst = arith.constant dense<0.000000e+00> : vector<128x256xf32>
    %2 = tpu.matmul %0, %1, %cst {dimension_numbers = #tpu.dot_dimension_numbers<[1], [0], [0], [1], [0, 0, 1, 1], [], []>} : vector<128x128xf32>, vector<128x256xf32>, vector<128x256xf32> -> vector<128x256xf32>
    %3 = vector.shape_cast %2 : vector<128x256xf32> to vector<128x8x32xf32>
    %c0_3 = arith.constant 0 : index
    %c0_4 = arith.constant 0 : index
    %4 = vector.load %arg2[%c0_3, %c0_4] : memref<128x32xf32, #tpu.memory_space<vmem>>, vector<128x32xf32>
    %5 = vector.shape_cast %4 : vector<128x32xf32> to vector<128x1x32xf32>
    %6 = vector.broadcast %5 : vector<128x1x32xf32> to vector<128x8x32xf32>
    %7 = arith.addf %3, %6 : vector<128x8x32xf32>
    %8 = math.tanh %7 : vector<128x8x32xf32>
    %c0_5 = arith.constant 0 : index
    %c0_6 = arith.constant 0 : index
    %9 = vector.load %arg4[%c0_5, %c0_6] : memref<1x32xf32, #tpu.memory_space<vmem>>, vector<1x32xf32>
    %10 = vector.shape_cast %9 : vector<1x32xf32> to vector<1x1x32xf32>
    %11 = vector.broadcast %10 : vector<1x1x32xf32> to vector<128x8x32xf32>
    %12 = arith.mulf %8, %11 : vector<128x8x32xf32>
    %cst_7 = arith.constant dense<0.000000e+00> : vector<128x8xf32>
    %13 = vector.multi_reduction <add>, %12, %cst_7 [2] : vector<128x8x32xf32> to vector<128x8xf32>
    %14 = tpu.transpose %13, [1, 0] : vector<128x8xf32> -> vector<8x128xf32>
    %c0_8 = arith.constant 0 : index
    %c0_9 = arith.constant 0 : index
    %15 = vector.load %arg5[%c0_8, %c0_9] : memref<8x128xf32, #tpu.memory_space<vmem>>, vector<8x128xf32>
    tpu.vector_store %arg5[%c0_8, %c0_9], %14 {strides = array<i32>} : memref<8x128xf32, #tpu.memory_space<vmem>>, vector<8x128xf32>,
    return
  }
  func.func @transform_0(%arg0: i32) -> (i32, i32) {
    %c0_i32 = arith.constant 0 : i32
    %c0_i32_0 = arith.constant 0 : i32
    return %arg0, %c0_i32 : i32, i32
  }
  func.func @transform_1(%arg0: i32) -> (i32, i32) {
    %c0_i32 = arith.constant 0 : i32
    %c0_i32_0 = arith.constant 0 : i32
    return %arg0, %c0_i32 : i32, i32
  }
  func.func @transform_2(%arg0: i32) -> (i32, i32) {
    %c0_i32 = arith.constant 0 : i32
    %c0_i32_0 = arith.constant 0 : i32
    %c0_i32_1 = arith.constant 0 : i32
    return %c0_i32, %c0_i32_0 : i32, i32
  }
  func.func @transform_3(%arg0: i32) -> (i32, i32) {
    %c0_i32 = arith.constant 0 : i32
    %c0_i32_0 = arith.constant 0 : i32
    %c0_i32_1 = arith.constant 0 : i32
    return %c0_i32, %c0_i32_0 : i32, i32
  }
  func.func @transform_4(%arg0: i32) -> (i32, i32) {
    %c0_i32 = arith.constant 0 : i32
    %c0_i32_0 = arith.constant 0 : i32
    return %c0_i32, %arg0 : i32, i32
  }
}

</mosaic_0001>

<llo_original>
// kernel: _score_pallas.1
$region0: #{_score_pallas.1}
  #allocation0 [shape = 'u32[]', space=smem, size = 0x4, offset = 0x4, fixed_abs, tag = 'smem constant byte address 0x4 - core index']
  #allocation1 [shape = 'u32[72,128]{1,0:T(1,128)}', space=vmem, size = 0x9000, scoped, tag = 'internal scratch']
  %s0 = inlined_call_operand.vmem [shape: f32[128,128], index: 0, kind: input, shape index: {}]
  %s1 = inlined_call_operand.vmem [shape: f32[128,32], index: 1, kind: input, shape index: {}]
  %s2 = inlined_call_operand.hbm [shape: f32[128,256], index: 2, kind: input, shape index: {}]
  %s3 = inlined_call_operand.vmem [shape: f32[1,32], index: 3, kind: input, shape index: {}]
  %s4 = inlined_call_operand.hbm [shape: f32[8,128], index: 4, kind: output, shape index: {}]
  %s5 = sld [smem:[#allocation0]]
  $region30: #{_score_pallas.1} parent=0
    _
  %s7 = ssub.s32 1, %s5
  %s8 = scalar_select 0, %s7, %s5
  $region1: #{_score_pallas.1} parent=0
    #allocation2 [shape = 'u8[131072]{0}', space=vmem, size = 0x20000, scoped, tag = 'input window, operand 2, single buffered']
    #allocation3 [shape = 's32[1]{0}', space=sflag, size = 0x4, scoped, tag = 'scoped memory for _score_pallas.1']
    #allocation4 [shape = 's32[1]{0}', space=sflag, size = 0x4, scoped, tag = 'scoped memory for _score_pallas.1']
    #allocation5 [shape = 'u8[4096]{0}', space=vmem, size = 0x1000, scoped, tag = 'output window, operand 0, single buffered']
    %9 = vsyncpa [#allocation3], 0
    %10 = vsyncpa [#allocation4], 0
    // Predicated region
    $region2: #{_score_pallas.1} parent=1 // pred_check
      _
    $region3: #{_score_pallas.1} parent=1 // pred_check_branch
      %12 = sbr.rel (0) target = $region5
    $region4: #{_score_pallas.1} parent=1 // pred_region
      _
    $region5: #{_score_pallas.1} parent=1 // pred_fallthru
      _
    // Predicated region
    $region6: #{_score_pallas.1} parent=1 // pred_check
      _
    $region7: #{_score_pallas.1} parent=1 // pred_check_branch
      %14 = sbr.rel (0) target = $region9
    $region8: #{_score_pallas.1} parent=1 // pred_region
      _
    $region9: #{_score_pallas.1} parent=1 // pred_fallthru
      _
    // Predicated region
    $region10: #{_score_pallas.1} parent=1 // pred_check
      _
    $region11: #{_score_pallas.1} parent=1 // pred_check_branch
      %16 = sbr.rel (0) target = $region13
    $region12: #{_score_pallas.1} parent=1 // pred_region
      %18 = vsyncadd [#allocation3], 0
      %s19 = sshll.u32 %s2, 4
      %s20 = int_to_ptr.hbm [resolvable:$true] %s19
      %s21 = sshll.u32 [#allocation2], 4
      %s22 = int_to_ptr.vmem [resolvable:$true] %s21
      %27 = dma.hbm_to_vmem [thread:$0]  %s20, 4096, %s22, [#allocation3], 256, 256, 16
    $region13: #{_score_pallas.1} parent=1 // pred_fallthru
      _
    // Predicated region
    $region14: #{_score_pallas.1} parent=1 // pred_check
      _
    $region15: #{_score_pallas.1} parent=1 // pred_check_branch
      %29 = sbr.rel (0) target = $region17
    $region16: #{_score_pallas.1} parent=1 // pred_region
      _
    $region17: #{_score_pallas.1} parent=1 // pred_fallthru
      _
    // Predicated region
    $region18: #{_score_pallas.1} parent=1 // pred_check
      _
    $region19: #{_score_pallas.1} parent=1 // pred_check_branch
      %31 = sbr.rel (0) target = $region21
    $region20: #{_score_pallas.1} parent=1 // pred_region
      %33 = dma.done [#allocation3], 4096
    $region21: #{_score_pallas.1} parent=1 // pred_fallthru
      _
    %v34 = vld [vmem:[%s0] sm:$0xff]
    %v35 = vld [vmem:[%s0 + $0x8] sm:$0xff]
    %v36 = vld [vmem:[%s0 + $0x10] sm:$0xff]
    %v37 = vld [vmem:[%s0 + $0x18] sm:$0xff]
    %v38 = vld [vmem:[%s0 + $0x20] sm:$0xff]
    %v39 = vld [vmem:[%s0 + $0x28] sm:$0xff]
    %v40 = vld [vmem:[%s0 + $0x30] sm:$0xff]
    %v41 = vld [vmem:[%s0 + $0x38] sm:$0xff]
    %v42 = vld [vmem:[%s0 + $0x40] sm:$0xff]
    %v43 = vld [vmem:[%s0 + $0x48] sm:$0xff]
    %v44 = vld [vmem:[%s0 + $0x50] sm:$0xff]
    %v45 = vld [vmem:[%s0 + $0x58] sm:$0xff]
    %v46 = vld [vmem:[%s0 + $0x60] sm:$0xff]
    %v47 = vld [vmem:[%s0 + $0x68] sm:$0xff]
    %v48 = vld [vmem:[%s0 + $0x70] sm:$0xff]
    %v49 = vld [vmem:[%s0 + $0x78] sm:$0xff]
    %v50 = vld [vmem:[#allocation2] sm:$0xff]
    %v51 = vld [vmem:[#allocation2 + $0x8] sm:$0xff]
    %v52 = vld [vmem:[#allocation2 + $0x10] sm:$0xff]
    %v53 = vld [vmem:[#allocation2 + $0x18] sm:$0xff]
    %v54 = vld [vmem:[#allocation2 + $0x20] sm:$0xff]
    %v55 = vld [vmem:[#allocation2 + $0x28] sm:$0xff]
    %v56 = vld [vmem:[#allocation2 + $0x30] sm:$0xff]
    %v57 = vld [vmem:[#allocation2 + $0x38] sm:$0xff]
    %v58 = vld [vmem:[#allocation2 + $0x40] sm:$0xff]
    %v59 = vld [vmem:[#allocation2 + $0x48] sm:$0xff]
    %v60 = vld [vmem:[#allocation2 + $0x50] sm:$0xff]
    %v61 = vld [vmem:[#allocation2 + $0x58] sm:$0xff]
    %v62 = vld [vmem:[#allocation2 + $0x60] sm:$0xff]
    %v63 = vld [vmem:[#allocation2 + $0x68] sm:$0xff]
    %v64 = vld [vmem:[#allocation2 + $0x70] sm:$0xff]
    %v65 = vld [vmem:[#allocation2 + $0x78] sm:$0xff]
    %v66 = vld [vmem:[#allocation2 + $0x80] sm:$0xff]
    %v67 = vld [vmem:[#allocation2 + $0x88] sm:$0xff]
    %v68 = vld [vmem:[#allocation2 + $0x90] sm:$0xff]
    %v69 = vld [vmem:[#allocation2 + $0x98] sm:$0xff]
    %v70 = vld [vmem:[#allocation2 + $0xa0] sm:$0xff]
    %v71 = vld [vmem:[#allocation2 + $0xa8] sm:$0xff]
    %v72 = vld [vmem:[#allocation2 + $0xb0] sm:$0xff]
    %v73 = vld [vmem:[#allocation2 + $0xb8] sm:$0xff]
    %v74 = vld [vmem:[#allocation2 + $0xc0] sm:$0xff]
    %v75 = vld [vmem:[#allocation2 + $0xc8] sm:$0xff]
    %v76 = vld [vmem:[#allocation2 + $0xd0] sm:$0xff]
    %v77 = vld [vmem:[#allocation2 + $0xd8] sm:$0xff]
    %v78 = vld [vmem:[#allocation2 + $0xe0] sm:$0xff]
    %v79 = vld [vmem:[#allocation2 + $0xe8] sm:$0xff]
    %v80 = vld [vmem:[#allocation2 + $0xf0] sm:$0xff]
    %v81 = vld [vmem:[#allocation2 + $0xf8] sm:$0xff]
    %82 = vmatpush.msra.mxu0 %v80
    %83 = vmatpush.msra.mxu0 %v78
    %84 = vmatpush.msra.mxu0 %v76
    %85 = vmatpush.msra.mxu0 %v74
    %86 = vmatpush.msra.mxu0 %v72
    %87 = vmatpush.msra.mxu0 %v70
    %88 = vmatpush.msra.mxu0 %v68
    %89 = vmatpush.msra.mxu0 %v66
    %90 = vmatpush.msra.mxu0 %v64
    %91 = vmatpush.msra.mxu0 %v62
    %92 = vmatpush.msra.mxu0 %v60
    %93 = vmatpush.msra.mxu0 %v58
    %94 = vmatpush.msra.mxu0 %v56
    %95 = vmatpush.msra.mxu0 %v54
    %96 = vmatpush.msra.mxu0 %v52
    %97 = vmatpush.msra.mxu0 %v50
    %98 = vmatmul.f32.gmra.mxu0 %v34
    %v99 = vpop.f32.mrf.mxu0
    %v100 = vadd.f32 0.0, %v99
    %101 = vmatmul.f32.gmra.mxu0 %v35
    %v102 = vpop.f32.mrf.mxu0
    %v103 = vadd.f32 0.0, %v102
    %104 = vmatmul.f32.gmra.mxu0 %v36
    %v105 = vpop.f32.mrf.mxu0
    %v106 = vadd.f32 0.0, %v105
    %107 = vmatmul.f32.gmra.mxu0 %v37
    %v108 = vpop.f32.mrf.mxu0
    %v109 = vadd.f32 0.0, %v108
    %110 = vmatmul.f32.gmra.mxu0 %v38
    %v111 = vpop.f32.mrf.mxu0
    %v112 = vadd.f32 0.0, %v111
    %113 = vmatmul.f32.gmra.mxu0 %v39
    %v114 = vpop.f32.mrf.mxu0
    %v115 = vadd.f32 0.0, %v114
    %116 = vmatmul.f32.gmra.mxu0 %v40
    %v117 = vpop.f32.mrf.mxu0
    %v118 = vadd.f32 0.0, %v117
    %119 = vmatmul.f32.gmra.mxu0 %v41
    %v120 = vpop.f32.mrf.mxu0
    %v121 = vadd.f32 0.0, %v120
    %122 = vmatmul.f32.gmra.mxu0 %v42
    %v123 = vpop.f32.mrf.mxu0
    %v124 = vadd.f32 0.0, %v123
    %125 = vmatmul.f32.gmra.mxu0 %v43
    %v126 = vpop.f32.mrf.mxu0
    %v127 = vadd.f32 0.0, %v126
    %128 = vmatmul.f32.gmra.mxu0 %v44
    %v129 = vpop.f32.mrf.mxu0
    %v130 = vadd.f32 0.0, %v129
    %131 = vmatmul.f32.gmra.mxu0 %v45
    %v132 = vpop.f32.mrf.mxu0
    %v133 = vadd.f32 0.0, %v132
    %134 = vmatmul.f32.gmra.mxu0 %v46
    %v135 = vpop.f32.mrf.mxu0
    %v136 = vadd.f32 0.0, %v135
    %137 = vmatmul.f32.gmra.mxu0 %v47
    %v138 = vpop.f32.mrf.mxu0
    %v139 = vadd.f32 0.0, %v138
    %140 = vmatmul.f32.gmra.mxu0 %v48
    %v141 = vpop.f32.mrf.mxu0
    %v142 = vadd.f32 0.0, %v141
    %143 = vmatmul.f32.gmra.mxu0 %v49
    %v144 = vpop.f32.mrf.mxu0
    %v145 = vadd.f32 0.0, %v144
    %146 = vdwg.mxu0
    %147 = vmatpush.msra.mxu0 %v81
    %148 = vmatpush.msra.mxu0 %v79
    %149 = vmatpush.msra.mxu0 %v77
    %150 = vmatpush.msra.mxu0 %v75
    %151 = vmatpush.msra.mxu0 %v73
    %152 = vmatpush.msra.mxu0 %v71
    %153 = vmatpush.msra.mxu0 %v69
    %154 = vmatpush.msra.mxu0 %v67
    %155 = vmatpush.msra.mxu0 %v65
    %156 = vmatpush.msra.mxu0 %v63
    %157 = vmatpush.msra.mxu0 %v61
    %158 = vmatpush.msra.mxu0 %v59
    %159 = vmatpush.msra.mxu0 %v57
    %160 = vmatpush.msra.mxu0 %v55
    %161 = vmatpush.msra.mxu0 %v53
    %162 = vmatpush.msra.mxu0 %v51
    %163 = vmatmul.f32.gmra.mxu0 %v34
    %v164 = vpop.f32.mrf.mxu0
    %v165 = vadd.f32 0.0, %v164
    %166 = vmatmul.f32.gmra.mxu0 %v35
    %v167 = vpop.f32.mrf.mxu0
    %v168 = vadd.f32 0.0, %v167
    %169 = vmatmul.f32.gmra.mxu0 %v36
    %v170 = vpop.f32.mrf.mxu0
    %v171 = vadd.f32 0.0, %v170
    %172 = vmatmul.f32.gmra.mxu0 %v37
    %v173 = vpop.f32.mrf.mxu0
    %v174 = vadd.f32 0.0, %v173
    %175 = vmatmul.f32.gmra.mxu0 %v38
    %v176 = vpop.f32.mrf.mxu0
    %v177 = vadd.f32 0.0, %v176
    %178 = vmatmul.f32.gmra.mxu0 %v39
    %v179 = vpop.f32.mrf.mxu0
    %v180 = vadd.f32 0.0, %v179
    %181 = vmatmul.f32.gmra.mxu0 %v40
    %v182 = vpop.f32.mrf.mxu0
    %v183 = vadd.f32 0.0, %v182
    %184 = vmatmul.f32.gmra.mxu0 %v41
    %v185 = vpop.f32.mrf.mxu0
    %v186 = vadd.f32 0.0, %v185
    %187 = vmatmul.f32.gmra.mxu0 %v42
    %v188 = vpop.f32.mrf.mxu0
    %v189 = vadd.f32 0.0, %v188
    %190 = vmatmul.f32.gmra.mxu0 %v43
    %v191 = vpop.f32.mrf.mxu0
    %v192 = vadd.f32 0.0, %v191
    %193 = vmatmul.f32.gmra.mxu0 %v44
    %v194 = vpop.f32.mrf.mxu0
    %v195 = vadd.f32 0.0, %v194
    %196 = vmatmul.f32.gmra.mxu0 %v45
    %v197 = vpop.f32.mrf.mxu0
    %v198 = vadd.f32 0.0, %v197
    %199 = vmatmul.f32.gmra.mxu0 %v46
    %v200 = vpop.f32.mrf.mxu0
    %v201 = vadd.f32 0.0, %v200
    %202 = vmatmul.f32.gmra.mxu0 %v47
    %v203 = vpop.f32.mrf.mxu0
    %v204 = vadd.f32 0.0, %v203
    %205 = vmatmul.f32.gmra.mxu0 %v48
    %v206 = vpop.f32.mrf.mxu0
    %v207 = vadd.f32 0.0, %v206
    %208 = vmatmul.f32.gmra.mxu0 %v49
    %v209 = vpop.f32.mrf.mxu0
    %v210 = vadd.f32 0.0, %v209
    %211 = vdwg.mxu0
    %228 = vrot.lane.b32.xlu0 %v100, 96
    %v229 = vpop.permute.xlu0 %228
    %230 = vrot.lane.b32.xlu0 %v103, 96
    %v231 = vpop.permute.xlu0 %230
    %232 = vrot.lane.b32.xlu0 %v106, 96
    %v233 = vpop.permute.xlu0 %232
    %234 = vrot.lane.b32.xlu0 %v109, 96
    %v235 = vpop.permute.xlu0 %234
    %236 = vrot.lane.b32.xlu0 %v112, 96
    %v237 = vpop.permute.xlu0 %236
    %238 = vrot.lane.b32.xlu0 %v115, 96
    %v239 = vpop.permute.xlu0 %238
    %240 = vrot.lane.b32.xlu0 %v118, 96
    %v241 = vpop.permute.xlu0 %240
    %242 = vrot.lane.b32.xlu0 %v121, 96
    %v243 = vpop.permute.xlu0 %242
    %244 = vrot.lane.b32.xlu0 %v124, 96
    %v245 = vpop.permute.xlu0 %244
    %246 = vrot.lane.b32.xlu0 %v127, 96
    %v247 = vpop.permute.xlu0 %246
    %248 = vrot.lane.b32.xlu0 %v130, 96
    %v249 = vpop.permute.xlu0 %248
    %250 = vrot.lane.b32.xlu0 %v133, 96
    %v251 = vpop.permute.xlu0 %250
    %252 = vrot.lane.b32.xlu0 %v136, 96
    %v253 = vpop.permute.xlu0 %252
    %254 = vrot.lane.b32.xlu0 %v139, 96
    %v255 = vpop.permute.xlu0 %254
    %256 = vrot.lane.b32.xlu0 %v142, 96
    %v257 = vpop.permute.xlu0 %256
    %258 = vrot.lane.b32.xlu0 %v145, 96
    %v259 = vpop.permute.xlu0 %258
    %276 = vrot.lane.b32.xlu0 %v100, 64
    %v277 = vpop.permute.xlu0 %276
    %278 = vrot.lane.b32.xlu0 %v103, 64
    %v279 = vpop.permute.xlu0 %278
    %280 = vrot.lane.b32.xlu0 %v106, 64
    %v281 = vpop.permute.xlu0 %280
    %282 = vrot.lane.b32.xlu0 %v109, 64
    %v283 = vpop.permute.xlu0 %282
    %284 = vrot.lane.b32.xlu0 %v112, 64
    %v285 = vpop.permute.xlu0 %284
    %286 = vrot.lane.b32.xlu0 %v115, 64
    %v287 = vpop.permute.xlu0 %286
    %288 = vrot.lane.b32.xlu0 %v118, 64
    %v289 = vpop.permute.xlu0 %288
    %290 = vrot.lane.b32.xlu0 %v121, 64
    %v291 = vpop.permute.xlu0 %290
    %292 = vrot.lane.b32.xlu0 %v124, 64
    %v293 = vpop.permute.xlu0 %292
    %294 = vrot.lane.b32.xlu0 %v127, 64
    %v295 = vpop.permute.xlu0 %294
    %296 = vrot.lane.b32.xlu0 %v130, 64
    %v297 = vpop.permute.xlu0 %296
    %298 = vrot.lane.b32.xlu0 %v133, 64
    %v299 = vpop.permute.xlu0 %298
    %300 = vrot.lane.b32.xlu0 %v136, 64
    %v301 = vpop.permute.xlu0 %300
    %302 = vrot.lane.b32.xlu0 %v139, 64
    %v303 = vpop.permute.xlu0 %302
    %304 = vrot.lane.b32.xlu0 %v142, 64
    %v305 = vpop.permute.xlu0 %304
    %306 = vrot.lane.b32.xlu0 %v145, 64
    %v307 = vpop.permute.xlu0 %306
    %324 = vrot.lane.b32.xlu0 %v100, 32
    %v325 = vpop.permute.xlu0 %324
    %326 = vrot.lane.b32.xlu0 %v103, 32
    %v327 = vpop.permute.xlu0 %326
    %328 = vrot.lane.b32.xlu0 %v106, 32
    %v329 = vpop.permute.xlu0 %328
    %330 = vrot.lane.b32.xlu0 %v109, 32
    %v331 = vpop.permute.xlu0 %330
    %332 = vrot.lane.b32.xlu0 %v112, 32
    %v333 = vpop.permute.xlu0 %332
    %334 = vrot.lane.b32.xlu0 %v115, 32
    %v335 = vpop.permute.xlu0 %334
    %336 = vrot.lane.b32.xlu0 %v118, 32
    %v337 = vpop.permute.xlu0 %336
    %338 = vrot.lane.b32.xlu0 %v121, 32
    %v339 = vpop.permute.xlu0 %338
    %340 = vrot.lane.b32.xlu0 %v124, 32
    %v341 = vpop.permute.xlu0 %340
    %342 = vrot.lane.b32.xlu0 %v127, 32
    %v343 = vpop.permute.xlu0 %342
    %344 = vrot.lane.b32.xlu0 %v130, 32
    %v345 = vpop.permute.xlu0 %344
    %346 = vrot.lane.b32.xlu0 %v133, 32
    %v347 = vpop.permute.xlu0 %346
    %348 = vrot.lane.b32.xlu0 %v136, 32
    %v349 = vpop.permute.xlu0 %348
    %350 = vrot.lane.b32.xlu0 %v139, 32
    %v351 = vpop.permute.xlu0 %350
    %352 = vrot.lane.b32.xlu0 %v142, 32
    %v353 = vpop.permute.xlu0 %352
    %354 = vrot.lane.b32.xlu0 %v145, 32
    %v355 = vpop.permute.xlu0 %354
    %388 = vrot.lane.b32.xlu0 %v165, 96
    %v389 = vpop.permute.xlu0 %388
    %390 = vrot.lane.b32.xlu0 %v168, 96
    %v391 = vpop.permute.xlu0 %390
    %392 = vrot.lane.b32.xlu0 %v171, 96
    %v393 = vpop.permute.xlu0 %392
    %394 = vrot.lane.b32.xlu0 %v174, 96
    %v395 = vpop.permute.xlu0 %394
    %396 = vrot.lane.b32.xlu0 %v177, 96
    %v397 = vpop.permute.xlu0 %396
    %398 = vrot.lane.b32.xlu0 %v180, 96
    %v399 = vpop.permute.xlu0 %398
    %400 = vrot.lane.b32.xlu0 %v183, 96
    %v401 = vpop.permute.xlu0 %400
    %402 = vrot.lane.b32.xlu0 %v186, 96
    %v403 = vpop.permute.xlu0 %402
    %404 = vrot.lane.b32.xlu0 %v189, 96
    %v405 = vpop.permute.xlu0 %404
    %406 = vrot.lane.b32.xlu0 %v192, 96
    %v407 = vpop.permute.xlu0 %406
    %408 = vrot.lane.b32.xlu0 %v195, 96
    %v409 = vpop.permute.xlu0 %408
    %410 = vrot.lane.b32.xlu0 %v198, 96
    %v411 = vpop.permute.xlu0 %410
    %412 = vrot.lane.b32.xlu0 %v201, 96
    %v413 = vpop.permute.xlu0 %412
    %414 = vrot.lane.b32.xlu0 %v204, 96
    %v415 = vpop.permute.xlu0 %414
    %416 = vrot.lane.b32.xlu0 %v207, 96
    %v417 = vpop.permute.xlu0 %416
    %418 = vrot.lane.b32.xlu0 %v210, 96
    %v419 = vpop.permute.xlu0 %418
    %436 = vrot.lane.b32.xlu0 %v165, 64
    %v437 = vpop.permute.xlu0 %436
    %438 = vrot.lane.b32.xlu0 %v168, 64
    %v439 = vpop.permute.xlu0 %438
    %440 = vrot.lane.b32.xlu0 %v171, 64
    %v441 = vpop.permute.xlu0 %440
    %442 = vrot.lane.b32.xlu0 %v174, 64
    %v443 = vpop.permute.xlu0 %442
    %444 = vrot.lane.b32.xlu0 %v177, 64
    %v445 = vpop.permute.xlu0 %444
    %446 = vrot.lane.b32.xlu0 %v180, 64
    %v447 = vpop.permute.xlu0 %446
    %448 = vrot.lane.b32.xlu0 %v183, 64
    %v449 = vpop.permute.xlu0 %448
    %450 = vrot.lane.b32.xlu0 %v186, 64
    %v451 = vpop.permute.xlu0 %450
    %452 = vrot.lane.b32.xlu0 %v189, 64
    %v453 = vpop.permute.xlu0 %452
    %454 = vrot.lane.b32.xlu0 %v192, 64
    %v455 = vpop.permute.xlu0 %454
    %456 = vrot.lane.b32.xlu0 %v195, 64
    %v457 = vpop.permute.xlu0 %456
    %458 = vrot.lane.b32.xlu0 %v198, 64
    %v459 = vpop.permute.xlu0 %458
    %460 = vrot.lane.b32.xlu0 %v201, 64
    %v461 = vpop.permute.xlu0 %460
    %462 = vrot.lane.b32.xlu0 %v204, 64
    %v463 = vpop.permute.xlu0 %462
    %464 = vrot.lane.b32.xlu0 %v207, 64
    %v465 = vpop.permute.xlu0 %464
    %466 = vrot.lane.b32.xlu0 %v210, 64
    %v467 = vpop.permute.xlu0 %466
    %484 = vrot.lane.b32.xlu0 %v165, 32
    %v485 = vpop.permute.xlu0 %484
    %486 = vrot.lane.b32.xlu0 %v168, 32
    %v487 = vpop.permute.xlu0 %486
    %488 = vrot.lane.b32.xlu0 %v171, 32
    %v489 = vpop.permute.xlu0 %488
    %490 = vrot.lane.b32.xlu0 %v174, 32
    %v491 = vpop.permute.xlu0 %490
    %492 = vrot.lane.b32.xlu0 %v177, 32
    %v493 = vpop.permute.xlu0 %492
    %494 = vrot.lane.b32.xlu0 %v180, 32
    %v495 = vpop.permute.xlu0 %494
    %496 = vrot.lane.b32.xlu0 %v183, 32
    %v497 = vpop.permute.xlu0 %496
    %498 = vrot.lane.b32.xlu0 %v186, 32
    %v499 = vpop.permute.xlu0 %498
    %500 = vrot.lane.b32.xlu0 %v189, 32
    %v501 = vpop.permute.xlu0 %500
    %502 = vrot.lane.b32.xlu0 %v192, 32
    %v503 = vpop.permute.xlu0 %502
    %504 = vrot.lane.b32.xlu0 %v195, 32
    %v505 = vpop.permute.xlu0 %504
    %506 = vrot.lane.b32.xlu0 %v198, 32
    %v507 = vpop.permute.xlu0 %506
    %508 = vrot.lane.b32.xlu0 %v201, 32
    %v509 = vpop.permute.xlu0 %508
    %510 = vrot.lane.b32.xlu0 %v204, 32
    %v511 = vpop.permute.xlu0 %510
    %512 = vrot.lane.b32.xlu0 %v207, 32
    %v513 = vpop.permute.xlu0 %512
    %514 = vrot.lane.b32.xlu0 %v210, 32
    %v515 = vpop.permute.xlu0 %514
    %v532 = vrot.slane %v277, 4
    %vm533 = vcmask 1047556
    %v534 = vsel %vm533, %v532, %v100
    %v535 = vrot.slane %v100, 4
    %v536 = vsel %vm533, %v277, %v535
    %v538 = vunpack.c.l.s4 1983009808
    %v539 = vunpack.c.0.s8 %v538
    %v540 = vperm.slane %v534, %v539
    %v542 = vunpack.c.l.s4 1983009808
    %v543 = vunpack.c.0.s8 %v542
    %v544 = vperm.slane %v536, %v543
    %v545 = vrot.slane %v325, 4
    %v546 = vsel %vm533, %v545, %v229
    %v547 = vrot.slane %v229, 4
    %v548 = vsel %vm533, %v325, %v547
    %v550 = vunpack.c.l.s4 1983009808
    %v551 = vunpack.c.0.s8 %v550
    %v552 = vperm.slane %v546, %v551
    %v554 = vunpack.c.l.s4 1983009808
    %v555 = vunpack.c.0.s8 %v554
    %v556 = vperm.slane %v548, %v555
    %v557 = vrot.slane %v437, 4
    %v558 = vsel %vm533, %v557, %v165
    %v559 = vrot.slane %v165, 4
    %v560 = vsel %vm533, %v437, %v559
    %v562 = vunpack.c.l.s4 1983009808
    %v563 = vunpack.c.0.s8 %v562
    %v564 = vperm.slane %v558, %v563
    %v566 = vunpack.c.l.s4 1983009808
    %v567 = vunpack.c.0.s8 %v566
    %v568 = vperm.slane %v560, %v567
    %v569 = vrot.slane %v485, 4
    %v570 = vsel %vm533, %v569, %v389
    %v571 = vrot.slane %v389, 4
    %v572 = vsel %vm533, %v485, %v571
    %v574 = vunpack.c.l.s4 1983009808
    %v575 = vunpack.c.0.s8 %v574
    %v576 = vperm.slane %v570, %v575
    %v578 = vunpack.c.l.s4 1983009808
    %v579 = vunpack.c.0.s8 %v578
    %v580 = vperm.slane %v572, %v579
    %v581 = vrot.slane %v552, 4
    %v582 = vsel %vm533, %v581, %v540
    %v583 = vrot.slane %v540, 4
    %v584 = vsel %vm533, %v552, %v583
    %v586 = vunpack.c.l.s4 1934713408
    %v587 = vunpack.c.0.s8 %v586
    %v588 = vperm.slane %v582, %v587
    %v590 = vunpack.c.l.s4 1934713408
    %v591 = vunpack.c.0.s8 %v590
    %v592 = vperm.slane %v584, %v591
    %v593 = vrot.slane %v556, 4
    %v594 = vsel %vm533, %v593, %v544
    %v595 = vrot.slane %v544, 4
    %v596 = vsel %vm533, %v556, %v595
    %v598 = vunpack.c.l.s4 1934713408
    %v599 = vunpack.c.0.s8 %v598
    %v600 = vperm.slane %v594, %v599
    %v602 = vunpack.c.l.s4 1934713408
    %v603 = vunpack.c.0.s8 %v602
    %v604 = vperm.slane %v596, %v603
    %v605 = vrot.slane %v576, 4
    %v606 = vsel %vm533, %v605, %v564
    %v607 = vrot.slane %v564, 4
    %v608 = vsel %vm533, %v576, %v607
    %v610 = vunpack.c.l.s4 1934713408
    %v611 = vunpack.c.0.s8 %v610
    %v612 = vperm.slane %v606, %v611
    %v614 = vunpack.c.l.s4 1934713408
    %v615 = vunpack.c.0.s8 %v614
    %v616 = vperm.slane %v608, %v615
    %v617 = vrot.slane %v580, 4
    %v618 = vsel %vm533, %v617, %v568
    %v619 = vrot.slane %v568, 4
    %v620 = vsel %vm533, %v580, %v619
    %v622 = vunpack.c.l.s4 1934713408
    %v623 = vunpack.c.0.s8 %v622
    %v624 = vperm.slane %v618, %v623
    %v626 = vunpack.c.l.s4 1934713408
    %v627 = vunpack.c.0.s8 %v626
    %v628 = vperm.slane %v620, %v627
    %v629 = vrot.slane %v612, 4
    %v630 = vsel %vm533, %v629, %v588
    %v631 = vrot.slane %v588, 4
    %v632 = vsel %vm533, %v612, %v631
    %v633 = vrot.slane %v616, 4
    %v634 = vsel %vm533, %v633, %v592
    %v635 = vrot.slane %v592, 4
    %v636 = vsel %vm533, %v616, %v635
    %v637 = vrot.slane %v624, 4
    %v638 = vsel %vm533, %v637, %v600
    %v639 = vrot.slane %v600, 4
    %v640 = vsel %vm533, %v624, %v639
    %v641 = vrot.slane %v628, 4
    %v642 = vsel %vm533, %v641, %v604
    %v643 = vrot.slane %v604, 4
    %v644 = vsel %vm533, %v628, %v643
    %v645 = vrot.slane %v279, 4
    %v646 = vsel %vm533, %v645, %v103
    %v647 = vrot.slane %v103, 4
    %v648 = vsel %vm533, %v279, %v647
    %v650 = vunpack.c.l.s4 1983009808
    %v651 = vunpack.c.0.s8 %v650
    %v652 = vperm.slane %v646, %v651
    %v654 = vunpack.c.l.s4 1983009808
    %v655 = vunpack.c.0.s8 %v654
    %v656 = vperm.slane %v648, %v655
    %v657 = vrot.slane %v327, 4
    %v658 = vsel %vm533, %v657, %v231
    %v659 = vrot.slane %v231, 4
    %v660 = vsel %vm533, %v327, %v659
    %v662 = vunpack.c.l.s4 1983009808
    %v663 = vunpack.c.0.s8 %v662
    %v664 = vperm.slane %v658, %v663
    %v666 = vunpack.c.l.s4 1983009808
    %v667 = vunpack.c.0.s8 %v666
    %v668 = vperm.slane %v660, %v667
    %v669 = vrot.slane %v439, 4
    %v670 = vsel %vm533, %v669, %v168
    %v671 = vrot.slane %v168, 4
    %v672 = vsel %vm533, %v439, %v671
    %v674 = vunpack.c.l.s4 1983009808
    %v675 = vunpack.c.0.s8 %v674
    %v676 = vperm.slane %v670, %v675
    %v678 = vunpack.c.l.s4 1983009808
    %v679 = vunpack.c.0.s8 %v678
    %v680 = vperm.slane %v672, %v679
    %v681 = vrot.slane %v487, 4
    %v682 = vsel %vm533, %v681, %v391
    %v683 = vrot.slane %v391, 4
    %v684 = vsel %vm533, %v487, %v683
    %v686 = vunpack.c.l.s4 1983009808
    %v687 = vunpack.c.0.s8 %v686
    %v688 = vperm.slane %v682, %v687
    %v690 = vunpack.c.l.s4 1983009808
    %v691 = vunpack.c.0.s8 %v690
    %v692 = vperm.slane %v684, %v691
    %v693 = vrot.slane %v664, 4
    %v694 = vsel %vm533, %v693, %v652
    %v695 = vrot.slane %v652, 4
    %v696 = vsel %vm533, %v664, %v695
    %v698 = vunpack.c.l.s4 1934713408
    %v699 = vunpack.c.0.s8 %v698
    %v700 = vperm.slane %v694, %v699
    %v702 = vunpack.c.l.s4 1934713408
    %v703 = vunpack.c.0.s8 %v702
    %v704 = vperm.slane %v696, %v703
    %v705 = vrot.slane %v668, 4
    %v706 = vsel %vm533, %v705, %v656
    %v707 = vrot.slane %v656, 4
    %v708 = vsel %vm533, %v668, %v707
    %v710 = vunpack.c.l.s4 1934713408
    %v711 = vunpack.c.0.s8 %v710
    %v712 = vperm.slane %v706, %v711
    %v714 = vunpack.c.l.s4 1934713408
    %v715 = vunpack.c.0.s8 %v714
    %v716 = vperm.slane %v708, %v715
    %v717 = vrot.slane %v688, 4
    %v718 = vsel %vm533, %v717, %v676
    %v719 = vrot.slane %v676, 4
    %v720 = vsel %vm533, %v688, %v719
    %v722 = vunpack.c.l.s4 1934713408
    %v723 = vunpack.c.0.s8 %v722
    %v724 = vperm.slane %v718, %v723
    %v726 = vunpack.c.l.s4 1934713408
    %v727 = vunpack.c.0.s8 %v726
    %v728 = vperm.slane %v720, %v727
    %v729 = vrot.slane %v692, 4
    %v730 = vsel %vm533, %v729, %v680
    %v731 = vrot.slane %v680, 4
    %v732 = vsel %vm533, %v692, %v731
    %v734 = vunpack.c.l.s4 1934713408
    %v735 = vunpack.c.0.s8 %v734
    %v736 = vperm.slane %v730, %v735
    %v738 = vunpack.c.l.s4 1934713408
    %v739 = vunpack.c.0.s8 %v738
    %v740 = vperm.slane %v732, %v739
    %v741 = vrot.slane %v724, 4
    %v742 = vsel %vm533, %v741, %v700
    %v743 = vrot.slane %v700, 4
    %v744 = vsel %vm533, %v724, %v743
    %v745 = vrot.slane %v728, 4
    %v746 = vsel %vm533, %v745, %v704
    %v747 = vrot.slane %v704, 4
    %v748 = vsel %vm533, %v728, %v747
    %v749 = vrot.slane %v736, 4
    %v750 = vsel %vm533, %v749, %v712
    %v751 = vrot.slane %v712, 4
    %v752 = vsel %vm533, %v736, %v751
    %v753 = vrot.slane %v740, 4
    %v754 = vsel %vm533, %v753, %v716
    %v755 = vrot.slane %v716, 4
    %v756 = vsel %vm533, %v740, %v755
    %v757 = vrot.slane %v281, 4
    %v758 = vsel %vm533, %v757, %v106
    %v759 = vrot.slane %v106, 4
    %v760 = vsel %vm533, %v281, %v759
    %v762 = vunpack.c.l.s4 1983009808
    %v763 = vunpack.c.0.s8 %v762
    %v764 = vperm.slane %v758, %v763
    %v766 = vunpack.c.l.s4 1983009808
    %v767 = vunpack.c.0.s8 %v766
    %v768 = vperm.slane %v760, %v767
    %v769 = vrot.slane %v329, 4
    %v770 = vsel %vm533, %v769, %v233
    %v771 = vrot.slane %v233, 4
    %v772 = vsel %vm533, %v329, %v771
    %v774 = vunpack.c.l.s4 1983009808
    %v775 = vunpack.c.0.s8 %v774
    %v776 = vperm.slane %v770, %v775
    %v778 = vunpack.c.l.s4 1983009808
    %v779 = vunpack.c.0.s8 %v778
    %v780 = vperm.slane %v772, %v779
    %v781 = vrot.slane %v441, 4
    %v782 = vsel %vm533, %v781, %v171
    %v783 = vrot.slane %v171, 4
    %v784 = vsel %vm533, %v441, %v783
    %v786 = vunpack.c.l.s4 1983009808
    %v787 = vunpack.c.0.s8 %v786
    %v788 = vperm.slane %v782, %v787
    %v790 = vunpack.c.l.s4 1983009808
    %v791 = vunpack.c.0.s8 %v790
    %v792 = vperm.slane %v784, %v791
    %v793 = vrot.slane %v489, 4
    %v794 = vsel %vm533, %v793, %v393
    %v795 = vrot.slane %v393, 4
    %v796 = vsel %vm533, %v489, %v795
    %v798 = vunpack.c.l.s4 1983009808
    %v799 = vunpack.c.0.s8 %v798
    %v800 = vperm.slane %v794, %v799
    %v802 = vunpack.c.l.s4 1983009808
    %v803 = vunpack.c.0.s8 %v802
    %v804 = vperm.slane %v796, %v803
    %v805 = vrot.slane %v776, 4
    %v806 = vsel %vm533, %v805, %v764
    %v807 = vrot.slane %v764, 4
    %v808 = vsel %vm533, %v776, %v807
    %v810 = vunpack.c.l.s4 1934713408
    %v811 = vunpack.c.0.s8 %v810
    %v812 = vperm.slane %v806, %v811
    %v814 = vunpack.c.l.s4 1934713408
    %v815 = vunpack.c.0.s8 %v814
    %v816 = vperm.slane %v808, %v815
    %v817 = vrot.slane %v780, 4
    %v818 = vsel %vm533, %v817, %v768
    %v819 = vrot.slane %v768, 4
    %v820 = vsel %vm533, %v780, %v819
    %v822 = vunpack.c.l.s4 1934713408
    %v823 = vunpack.c.0.s8 %v822
    %v824 = vperm.slane %v818, %v823
    %v826 = vunpack.c.l.s4 1934713408
    %v827 = vunpack.c.0.s8 %v826
    %v828 = vperm.slane %v820, %v827
    %v829 = vrot.slane %v800, 4
    %v830 = vsel %vm533, %v829, %v788
    %v831 = vrot.slane %v788, 4
    %v832 = vsel %vm533, %v800, %v831
    %v834 = vunpack.c.l.s4 1934713408
    %v835 = vunpack.c.0.s8 %v834
    %v836 = vperm.slane %v830, %v835
    %v838 = vunpack.c.l.s4 1934713408
    %v839 = vunpack.c.0.s8 %v838
    %v840 = vperm.slane %v832, %v839
    %v841 = vrot.slane %v804, 4
    %v842 = vsel %vm533, %v841, %v792
    %v843 = vrot.slane %v792, 4
    %v844 = vsel %vm533, %v804, %v843
    %v846 = vunpack.c.l.s4 1934713408
    %v847 = vunpack.c.0.s8 %v846
    %v848 = vperm.slane %v842, %v847
    %v850 = vunpack.c.l.s4 1934713408
    %v851 = vunpack.c.0.s8 %v850
    %v852 = vperm.slane %v844, %v851
    %v853 = vrot.slane %v836, 4
    %v854 = vsel %vm533, %v853, %v812
    %v855 = vrot.slane %v812, 4
    %v856 = vsel %vm533, %v836, %v855
    %v857 = vrot.slane %v840, 4
    %v858 = vsel %vm533, %v857, %v816
    %v859 = vrot.slane %v816, 4
    %v860 = vsel %vm533, %v840, %v859
    %v861 = vrot.slane %v848, 4
    %v862 = vsel %vm533, %v861, %v824
    %v863 = vrot.slane %v824, 4
    %v864 = vsel %vm533, %v848, %v863
    %v865 = vrot.slane %v852, 4
    %v866 = vsel %vm533, %v865, %v828
    %v867 = vrot.slane %v828, 4
    %v868 = vsel %vm533, %v852, %v867
    %v869 = vrot.slane %v283, 4
    %v870 = vsel %vm533, %v869, %v109
    %v871 = vrot.slane %v109, 4
    %v872 = vsel %vm533, %v283, %v871
    %v874 = vunpack.c.l.s4 1983009808
    %v875 = vunpack.c.0.s8 %v874
    %v876 = vperm.slane %v870, %v875
    %v878 = vunpack.c.l.s4 1983009808
    %v879 = vunpack.c.0.s8 %v878
    %v880 = vperm.slane %v872, %v879
    %v881 = vrot.slane %v331, 4
    %v882 = vsel %vm533, %v881, %v235
    %v883 = vrot.slane %v235, 4
    %v884 = vsel %vm533, %v331, %v883
    %v886 = vunpack.c.l.s4 1983009808
    %v887 = vunpack.c.0.s8 %v886
    %v888 = vperm.slane %v882, %v887
    %v890 = vunpack.c.l.s4 1983009808
    %v891 = vunpack.c.0.s8 %v890
    %v892 = vperm.slane %v884, %v891
    %v893 = vrot.slane %v443, 4
    %v894 = vsel %vm533, %v893, %v174
    %v895 = vrot.slane %v174, 4
    %v896 = vsel %vm533, %v443, %v895
    %v898 = vunpack.c.l.s4 1983009808
    %v899 = vunpack.c.0.s8 %v898
    %v900 = vperm.slane %v894, %v899
    %v902 = vunpack.c.l.s4 1983009808
    %v903 = vunpack.c.0.s8 %v902
    %v904 = vperm.slane %v896, %v903
    %v905 = vrot.slane %v491, 4
    %v906 = vsel %vm533, %v905, %v395
    %v907 = vrot.slane %v395, 4
    %v908 = vsel %vm533, %v491, %v907
    %v910 = vunpack.c.l.s4 1983009808
    %v911 = vunpack.c.0.s8 %v910
    %v912 = vperm.slane %v906, %v911
    %v914 = vunpack.c.l.s4 1983009808
    %v915 = vunpack.c.0.s8 %v914
    %v916 = vperm.slane %v908, %v915
    %v917 = vrot.slane %v888, 4
    %v918 = vsel %vm533, %v917, %v876
    %v919 = vrot.slane %v876, 4
    %v920 = vsel %vm533, %v888, %v919
    %v922 = vunpack.c.l.s4 1934713408
    %v923 = vunpack.c.0.s8 %v922
    %v924 = vperm.slane %v918, %v923
    %v926 = vunpack.c.l.s4 1934713408
    %v927 = vunpack.c.0.s8 %v926
    %v928 = vperm.slane %v920, %v927
    %v929 = vrot.slane %v892, 4
    %v930 = vsel %vm533, %v929, %v880
    %v931 = vrot.slane %v880, 4
    %v932 = vsel %vm533, %v892, %v931
    %v934 = vunpack.c.l.s4 1934713408
    %v935 = vunpack.c.0.s8 %v934
    %v936 = vperm.slane %v930, %v935
    %v938 = vunpack.c.l.s4 1934713408
    %v939 = vunpack.c.0.s8 %v938
    %v940 = vperm.slane %v932, %v939
    %v941 = vrot.slane %v912, 4
    %v942 = vsel %vm533, %v941, %v900
    %v943 = vrot.slane %v900, 4
    %v944 = vsel %vm533, %v912, %v943
    %v946 = vunpack.c.l.s4 1934713408
    %v947 = vunpack.c.0.s8 %v946
    %v948 = vperm.slane %v942, %v947
    %v950 = vunpack.c.l.s4 1934713408
    %v951 = vunpack.c.0.s8 %v950
    %v952 = vperm.slane %v944, %v951
    %v953 = vrot.slane %v916, 4
    %v954 = vsel %vm533, %v953, %v904
    %v955 = vrot.slane %v904, 4
    %v956 = vsel %vm533, %v916, %v955
    %v958 = vunpack.c.l.s4 1934713408
    %v959 = vunpack.c.0.s8 %v958
    %v960 = vperm.slane %v954, %v959
    %v962 = vunpack.c.l.s4 1934713408
    %v963 = vunpack.c.0.s8 %v962
    %v964 = vperm.slane %v956, %v963
    %v965 = vrot.slane %v948, 4
    %v966 = vsel %vm533, %v965, %v924
    %v967 = vrot.slane %v924, 4
    %v968 = vsel %vm533, %v948, %v967
    %v969 = vrot.slane %v952, 4
    %v970 = vsel %vm533, %v969, %v928
    %v971 = vrot.slane %v928, 4
    %v972 = vsel %vm533, %v952, %v971
    %v973 = vrot.slane %v960, 4
    %v974 = vsel %vm533, %v973, %v936
    %v975 = vrot.slane %v936, 4
    %v976 = vsel %vm533, %v960, %v975
    %v977 = vrot.slane %v964, 4
    %v978 = vsel %vm533, %v977, %v940
    %v979 = vrot.slane %v940, 4
    %v980 = vsel %vm533, %v964, %v979
    %v981 = vrot.slane %v285, 4
    %v982 = vsel %vm533, %v981, %v112
    %v983 = vrot.slane %v112, 4
    %v984 = vsel %vm533, %v285, %v983
    %v986 = vunpack.c.l.s4 1983009808
    %v987 = vunpack.c.0.s8 %v986
    %v988 = vperm.slane %v982, %v987
    %v990 = vunpack.c.l.s4 1983009808
    %v991 = vunpack.c.0.s8 %v990
    %v992 = vperm.slane %v984, %v991
    %v993 = vrot.slane %v333, 4
    %v994 = vsel %vm533, %v993, %v237
    %v995 = vrot.slane %v237, 4
    %v996 = vsel %vm533, %v333, %v995
    %v998 = vunpack.c.l.s4 1983009808
    %v999 = vunpack.c.0.s8 %v998
    %v1000 = vperm.slane %v994, %v999
    %v1002 = vunpack.c.l.s4 1983009808
    %v1003 = vunpack.c.0.s8 %v1002
    %v1004 = vperm.slane %v996, %v1003
    %v1005 = vrot.slane %v445, 4
    %v1006 = vsel %vm533, %v1005, %v177
    %v1007 = vrot.slane %v177, 4
    %v1008 = vsel %vm533, %v445, %v1007
    %v1010 = vunpack.c.l.s4 1983009808
    %v1011 = vunpack.c.0.s8 %v1010
    %v1012 = vperm.slane %v1006, %v1011
    %v1014 = vunpack.c.l.s4 1983009808
    %v1015 = vunpack.c.0.s8 %v1014
    %v1016 = vperm.slane %v1008, %v1015
    %v1017 = vrot.slane %v493, 4
    %v1018 = vsel %vm533, %v1017, %v397
    %v1019 = vrot.slane %v397, 4
    %v1020 = vsel %vm533, %v493, %v1019
    %v1022 = vunpack.c.l.s4 1983009808
    %v1023 = vunpack.c.0.s8 %v1022
    %v1024 = vperm.slane %v1018, %v1023
    %v1026 = vunpack.c.l.s4 1983009808
    %v1027 = vunpack.c.0.s8 %v1026
    %v1028 = vperm.slane %v1020, %v1027
    %v1029 = vrot.slane %v1000, 4
    %v1030 = vsel %vm533, %v1029, %v988
    %v1031 = vrot.slane %v988, 4
    %v1032 = vsel %vm533, %v1000, %v1031
    %v1034 = vunpack.c.l.s4 1934713408
    %v1035 = vunpack.c.0.s8 %v1034
    %v1036 = vperm.slane %v1030, %v1035
    %v1038 = vunpack.c.l.s4 1934713408
    %v1039 = vunpack.c.0.s8 %v1038
    %v1040 = vperm.slane %v1032, %v1039
    %v1041 = vrot.slane %v1004, 4
    %v1042 = vsel %vm533, %v1041, %v992
    %v1043 = vrot.slane %v992, 4
    %v1044 = vsel %vm533, %v1004, %v1043
    %v1046 = vunpack.c.l.s4 1934713408
    %v1047 = vunpack.c.0.s8 %v1046
    %v1048 = vperm.slane %v1042, %v1047
    %v1050 = vunpack.c.l.s4 1934713408
    %v1051 = vunpack.c.0.s8 %v1050
    %v1052 = vperm.slane %v1044, %v1051
    %v1053 = vrot.slane %v1024, 4
    %v1054 = vsel %vm533, %v1053, %v1012
    %v1055 = vrot.slane %v1012, 4
    %v1056 = vsel %vm533, %v1024, %v1055
    %v1058 = vunpack.c.l.s4 1934713408
    %v1059 = vunpack.c.0.s8 %v1058
    %v1060 = vperm.slane %v1054, %v1059
    %v1062 = vunpack.c.l.s4 1934713408
    %v1063 = vunpack.c.0.s8 %v1062
    %v1064 = vperm.slane %v1056, %v1063
    %v1065 = vrot.slane %v1028, 4
    %v1066 = vsel %vm533, %v1065, %v1016
    %v1067 = vrot.slane %v1016, 4
    %v1068 = vsel %vm533, %v1028, %v1067
    %v1070 = vunpack.c.l.s4 1934713408
    %v1071 = vunpack.c.0.s8 %v1070
    %v1072 = vperm.slane %v1066, %v1071
    %v1074 = vunpack.c.l.s4 1934713408
    %v1075 = vunpack.c.0.s8 %v1074
    %v1076 = vperm.slane %v1068, %v1075
    %v1077 = vrot.slane %v1060, 4
    %v1078 = vsel %vm533, %v1077, %v1036
    %v1079 = vrot.slane %v1036, 4
    %v1080 = vsel %vm533, %v1060, %v1079
    %v1081 = vrot.slane %v1064, 4
    %v1082 = vsel %vm533, %v1081, %v1040
    %v1083 = vrot.slane %v1040, 4
    %v1084 = vsel %vm533, %v1064, %v1083
    %v1085 = vrot.slane %v1072, 4
    %v1086 = vsel %vm533, %v1085, %v1048
    %v1087 = vrot.slane %v1048, 4
    %v1088 = vsel %vm533, %v1072, %v1087
    %v1089 = vrot.slane %v1076, 4
    %v1090 = vsel %vm533, %v1089, %v1052
    %v1091 = vrot.slane %v1052, 4
    %v1092 = vsel %vm533, %v1076, %v1091
    %v1093 = vrot.slane %v287, 4
    %v1094 = vsel %vm533, %v1093, %v115
    %v1095 = vrot.slane %v115, 4
    %v1096 = vsel %vm533, %v287, %v1095
    %v1098 = vunpack.c.l.s4 1983009808
    %v1099 = vunpack.c.0.s8 %v1098
    %v1100 = vperm.slane %v1094, %v1099
    %v1102 = vunpack.c.l.s4 1983009808
    %v1103 = vunpack.c.0.s8 %v1102
    %v1104 = vperm.slane %v1096, %v1103
    %v1105 = vrot.slane %v335, 4
    %v1106 = vsel %vm533, %v1105, %v239
    %v1107 = vrot.slane %v239, 4
    %v1108 = vsel %vm533, %v335, %v1107
    %v1110 = vunpack.c.l.s4 1983009808
    %v1111 = vunpack.c.0.s8 %v1110
    %v1112 = vperm.slane %v1106, %v1111
    %v1114 = vunpack.c.l.s4 1983009808
    %v1115 = vunpack.c.0.s8 %v1114
    %v1116 = vperm.slane %v1108, %v1115
    %v1117 = vrot.slane %v447, 4
    %v1118 = vsel %vm533, %v1117, %v180
    %v1119 = vrot.slane %v180, 4
    %v1120 = vsel %vm533, %v447, %v1119
    %v1122 = vunpack.c.l.s4 1983009808
    %v1123 = vunpack.c.0.s8 %v1122
    %v1124 = vperm.slane %v1118, %v1123
    %v1126 = vunpack.c.l.s4 1983009808
    %v1127 = vunpack.c.0.s8 %v1126
    %v1128 = vperm.slane %v1120, %v1127
    %v1129 = vrot.slane %v495, 4
    %v1130 = vsel %vm533, %v1129, %v399
    %v1131 = vrot.slane %v399, 4
    %v1132 = vsel %vm533, %v495, %v1131
    %v1134 = vunpack.c.l.s4 1983009808
    %v1135 = vunpack.c.0.s8 %v1134
    %v1136 = vperm.slane %v1130, %v1135
    %v1138 = vunpack.c.l.s4 1983009808
    %v1139 = vunpack.c.0.s8 %v1138
    %v1140 = vperm.slane %v1132, %v1139
    %v1141 = vrot.slane %v1112, 4
    %v1142 = vsel %vm533, %v1141, %v1100
    %v1143 = vrot.slane %v1100, 4
    %v1144 = vsel %vm533, %v1112, %v1143
    %v1146 = vunpack.c.l.s4 1934713408
    %v1147 = vunpack.c.0.s8 %v1146
    %v1148 = vperm.slane %v1142, %v1147
    %v1150 = vunpack.c.l.s4 1934713408
    %v1151 = vunpack.c.0.s8 %v1150
    %v1152 = vperm.slane %v1144, %v1151
    %v1153 = vrot.slane %v1116, 4
    %v1154 = vsel %vm533, %v1153, %v1104
    %v1155 = vrot.slane %v1104, 4
    %v1156 = vsel %vm533, %v1116, %v1155
    %v1158 = vunpack.c.l.s4 1934713408
    %v1159 = vunpack.c.0.s8 %v1158
    %v1160 = vperm.slane %v1154, %v1159
    %v1162 = vunpack.c.l.s4 1934713408
    %v1163 = vunpack.c.0.s8 %v1162
    %v1164 = vperm.slane %v1156, %v1163
    %v1165 = vrot.slane %v1136, 4
    %v1166 = vsel %vm533, %v1165, %v1124
    %v1167 = vrot.slane %v1124, 4
    %v1168 = vsel %vm533, %v1136, %v1167
    %v1170 = vunpack.c.l.s4 1934713408
    %v1171 = vunpack.c.0.s8 %v1170
    %v1172 = vperm.slane %v1166, %v1171
    %v1174 = vunpack.c.l.s4 1934713408
    %v1175 = vunpack.c.0.s8 %v1174
    %v1176 = vperm.slane %v1168, %v1175
    %v1177 = vrot.slane %v1140, 4
    %v1178 = vsel %vm533, %v1177, %v1128
    %v1179 = vrot.slane %v1128, 4
    %v1180 = vsel %vm533, %v1140, %v1179
    %v1182 = vunpack.c.l.s4 1934713408
    %v1183 = vunpack.c.0.s8 %v1182
    %v1184 = vperm.slane %v1178, %v1183
    %v1186 = vunpack.c.l.s4 1934713408
    %v1187 = vunpack.c.0.s8 %v1186
    %v1188 = vperm.slane %v1180, %v1187
    %v1189 = vrot.slane %v1172, 4
    %v1190 = vsel %vm533, %v1189, %v1148
    %v1191 = vrot.slane %v1148, 4
    %v1192 = vsel %vm533, %v1172, %v1191
    %v1193 = vrot.slane %v1176, 4
    %v1194 = vsel %vm533, %v1193, %v1152
    %v1195 = vrot.slane %v1152, 4
    %v1196 = vsel %vm533, %v1176, %v1195
    %v1197 = vrot.slane %v1184, 4
    %v1198 = vsel %vm533, %v1197, %v1160
    %v1199 = vrot.slane %v1160, 4
    %v1200 = vsel %vm533, %v1184, %v1199
    %v1201 = vrot.slane %v1188, 4
    %v1202 = vsel %vm533, %v1201, %v1164
    %v1203 = vrot.slane %v1164, 4
    %v1204 = vsel %vm533, %v1188, %v1203
    %v1205 = vrot.slane %v289, 4
    %v1206 = vsel %vm533, %v1205, %v118
    %v1207 = vrot.slane %v118, 4
    %v1208 = vsel %vm533, %v289, %v1207
    %v1210 = vunpack.c.l.s4 1983009808
    %v1211 = vunpack.c.0.s8 %v1210
    %v1212 = vperm.slane %v1206, %v1211
    %v1214 = vunpack.c.l.s4 1983009808
    %v1215 = vunpack.c.0.s8 %v1214
    %v1216 = vperm.slane %v1208, %v1215
    %v1217 = vrot.slane %v337, 4
    %v1218 = vsel %vm533, %v1217, %v241
    %v1219 = vrot.slane %v241, 4
    %v1220 = vsel %vm533, %v337, %v1219
    %v1222 = vunpack.c.l.s4 1983009808
    %v1223 = vunpack.c.0.s8 %v1222
    %v1224 = vperm.slane %v1218, %v1223
    %v1226 = vunpack.c.l.s4 1983009808
    %v1227 = vunpack.c.0.s8 %v1226
    %v1228 = vperm.slane %v1220, %v1227
    %v1229 = vrot.slane %v449, 4
    %v1230 = vsel %vm533, %v1229, %v183
    %v1231 = vrot.slane %v183, 4
    %v1232 = vsel %vm533, %v449, %v1231
    %v1234 = vunpack.c.l.s4 1983009808
    %v1235 = vunpack.c.0.s8 %v1234
    %v1236 = vperm.slane %v1230, %v1235
    %v1238 = vunpack.c.l.s4 1983009808
    %v1239 = vunpack.c.0.s8 %v1238
    %v1240 = vperm.slane %v1232, %v1239
    %v1241 = vrot.slane %v497, 4
    %v1242 = vsel %vm533, %v1241, %v401
    %v1243 = vrot.slane %v401, 4
    %v1244 = vsel %vm533, %v497, %v1243
    %v1246 = vunpack.c.l.s4 1983009808
    %v1247 = vunpack.c.0.s8 %v1246
    %v1248 = vperm.slane %v1242, %v1247
    %v1250 = vunpack.c.l.s4 1983009808
    %v1251 = vunpack.c.0.s8 %v1250
    %v1252 = vperm.slane %v1244, %v1251
    %v1253 = vrot.slane %v1224, 4
    %v1254 = vsel %vm533, %v1253, %v1212
    %v1255 = vrot.slane %v1212, 4
    %v1256 = vsel %vm533, %v1224, %v1255
    %v1258 = vunpack.c.l.s4 1934713408
    %v1259 = vunpack.c.0.s8 %v1258
    %v1260 = vperm.slane %v1254, %v1259
    %v1262 = vunpack.c.l.s4 1934713408
    %v1263 = vunpack.c.0.s8 %v1262
    %v1264 = vperm.slane %v1256, %v1263
    %v1265 = vrot.slane %v1228, 4
    %v1266 = vsel %vm533, %v1265, %v1216
    %v1267 = vrot.slane %v1216, 4
    %v1268 = vsel %vm533, %v1228, %v1267
    %v1270 = vunpack.c.l.s4 1934713408
    %v1271 = vunpack.c.0.s8 %v1270
    %v1272 = vperm.slane %v1266, %v1271
    %v1274 = vunpack.c.l.s4 1934713408
    %v1275 = vunpack.c.0.s8 %v1274
    %v1276 = vperm.slane %v1268, %v1275
    %v1277 = vrot.slane %v1248, 4
    %v1278 = vsel %vm533, %v1277, %v1236
    %v1279 = vrot.slane %v1236, 4
    %v1280 = vsel %vm533, %v1248, %v1279
    %v1282 = vunpack.c.l.s4 1934713408
    %v1283 = vunpack.c.0.s8 %v1282
    %v1284 = vperm.slane %v1278, %v1283
    %v1286 = vunpack.c.l.s4 1934713408
    %v1287 = vunpack.c.0.s8 %v1286
    %v1288 = vperm.slane %v1280, %v1287
    %v1289 = vrot.slane %v1252, 4
    %v1290 = vsel %vm533, %v1289, %v1240
    %v1291 = vrot.slane %v1240, 4
    %v1292 = vsel %vm533, %v1252, %v1291
    %v1294 = vunpack.c.l.s4 1934713408
    %v1295 = vunpack.c.0.s8 %v1294
    %v1296 = vperm.slane %v1290, %v1295
    %v1298 = vunpack.c.l.s4 1934713408
    %v1299 = vunpack.c.0.s8 %v1298
    %v1300 = vperm.slane %v1292, %v1299
    %v1301 = vrot.slane %v1284, 4
    %v1302 = vsel %vm533, %v1301, %v1260
    %v1303 = vrot.slane %v1260, 4
    %v1304 = vsel %vm533, %v1284, %v1303
    %v1305 = vrot.slane %v1288, 4
    %v1306 = vsel %vm533, %v1305, %v1264
    %v1307 = vrot.slane %v1264, 4
    %v1308 = vsel %vm533, %v1288, %v1307
    %v1309 = vrot.slane %v1296, 4
    %v1310 = vsel %vm533, %v1309, %v1272
    %v1311 = vrot.slane %v1272, 4
    %v1312 = vsel %vm533, %v1296, %v1311
    %v1313 = vrot.slane %v1300, 4
    %v1314 = vsel %vm533, %v1313, %v1276
    %v1315 = vrot.slane %v1276, 4
    %v1316 = vsel %vm533, %v1300, %v1315
    %v1317 = vrot.slane %v291, 4
    %v1318 = vsel %vm533, %v1317, %v121
    %v1319 = vrot.slane %v121, 4
    %v1320 = vsel %vm533, %v291, %v1319
    %v1322 = vunpack.c.l.s4 1983009808
    %v1323 = vunpack.c.0.s8 %v1322
    %v1324 = vperm.slane %v1318, %v1323
    %v1326 = vunpack.c.l.s4 1983009808
    %v1327 = vunpack.c.0.s8 %v1326
    %v1328 = vperm.slane %v1320, %v1327
    %v1329 = vrot.slane %v339, 4
    %v1330 = vsel %vm533, %v1329, %v243
    %v1331 = vrot.slane %v243, 4
    %v1332 = vsel %vm533, %v339, %v1331
    %v1334 = vunpack.c.l.s4 1983009808
    %v1335 = vunpack.c.0.s8 %v1334
    %v1336 = vperm.slane %v1330, %v1335
    %v1338 = vunpack.c.l.s4 1983009808
    %v1339 = vunpack.c.0.s8 %v1338
    %v1340 = vperm.slane %v1332, %v1339
    %v1341 = vrot.slane %v451, 4
    %v1342 = vsel %vm533, %v1341, %v186
    %v1343 = vrot.slane %v186, 4
    %v1344 = vsel %vm533, %v451, %v1343
    %v1346 = vunpack.c.l.s4 1983009808
    %v1347 = vunpack.c.0.s8 %v1346
    %v1348 = vperm.slane %v1342, %v1347
    %v1350 = vunpack.c.l.s4 1983009808
    %v1351 = vunpack.c.0.s8 %v1350
    %v1352 = vperm.slane %v1344, %v1351
    %v1353 = vrot.slane %v499, 4
    %v1354 = vsel %vm533, %v1353, %v403
    %v1355 = vrot.slane %v403, 4
    %v1356 = vsel %vm533, %v499, %v1355
    %v1358 = vunpack.c.l.s4 1983009808
    %v1359 = vunpack.c.0.s8 %v1358
    %v1360 = vperm.slane %v1354, %v1359
    %v1362 = vunpack.c.l.s4 1983009808
    %v1363 = vunpack.c.0.s8 %v1362
    %v1364 = vperm.slane %v1356, %v1363
    %v1365 = vrot.slane %v1336, 4
    %v1366 = vsel %vm533, %v1365, %v1324
    %v1367 = vrot.slane %v1324, 4
    %v1368 = vsel %vm533, %v1336, %v1367
    %v1370 = vunpack.c.l.s4 1934713408
    %v1371 = vunpack.c.0.s8 %v1370
    %v1372 = vperm.slane %v1366, %v1371
    %v1374 = vunpack.c.l.s4 1934713408
    %v1375 = vunpack.c.0.s8 %v1374
    %v1376 = vperm.slane %v1368, %v1375
    %v1377 = vrot.slane %v1340, 4
    %v1378 = vsel %vm533, %v1377, %v1328
    %v1379 = vrot.slane %v1328, 4
    %v1380 = vsel %vm533, %v1340, %v1379
    %v1382 = vunpack.c.l.s4 1934713408
    %v1383 = vunpack.c.0.s8 %v1382
    %v1384 = vperm.slane %v1378, %v1383
    %v1386 = vunpack.c.l.s4 1934713408
    %v1387 = vunpack.c.0.s8 %v1386
    %v1388 = vperm.slane %v1380, %v1387
    %v1389 = vrot.slane %v1360, 4
    %v1390 = vsel %vm533, %v1389, %v1348
    %v1391 = vrot.slane %v1348, 4
    %v1392 = vsel %vm533, %v1360, %v1391
    %v1394 = vunpack.c.l.s4 1934713408
    %v1395 = vunpack.c.0.s8 %v1394
    %v1396 = vperm.slane %v1390, %v1395
    %v1398 = vunpack.c.l.s4 1934713408
    %v1399 = vunpack.c.0.s8 %v1398
    %v1400 = vperm.slane %v1392, %v1399
    %v1401 = vrot.slane %v1364, 4
    %v1402 = vsel %vm533, %v1401, %v1352
    %v1403 = vrot.slane %v1352, 4
    %v1404 = vsel %vm533, %v1364, %v1403
    %v1406 = vunpack.c.l.s4 1934713408
    %v1407 = vunpack.c.0.s8 %v1406
    %v1408 = vperm.slane %v1402, %v1407
    %v1410 = vunpack.c.l.s4 1934713408
    %v1411 = vunpack.c.0.s8 %v1410
    %v1412 = vperm.slane %v1404, %v1411
    %v1413 = vrot.slane %v1396, 4
    %v1414 = vsel %vm533, %v1413, %v1372
    %v1415 = vrot.slane %v1372, 4
    %v1416 = vsel %vm533, %v1396, %v1415
    %v1417 = vrot.slane %v1400, 4
    %v1418 = vsel %vm533, %v1417, %v1376
    %v1419 = vrot.slane %v1376, 4
    %v1420 = vsel %vm533, %v1400, %v1419
    %v1421 = vrot.slane %v1408, 4
    %v1422 = vsel %vm533, %v1421, %v1384
    %v1423 = vrot.slane %v1384, 4
    %v1424 = vsel %vm533, %v1408, %v1423
    %v1425 = vrot.slane %v1412, 4
    %v1426 = vsel %vm533, %v1425, %v1388
    %v1427 = vrot.slane %v1388, 4
    %v1428 = vsel %vm533, %v1412, %v1427
    %v1429 = vrot.slane %v293, 4
    %v1430 = vsel %vm533, %v1429, %v124
    %v1431 = vrot.slane %v124, 4
    %v1432 = vsel %vm533, %v293, %v1431
    %v1434 = vunpack.c.l.s4 1983009808
    %v1435 = vunpack.c.0.s8 %v1434
    %v1436 = vperm.slane %v1430, %v1435
    %v1438 = vunpack.c.l.s4 1983009808
    %v1439 = vunpack.c.0.s8 %v1438
    %v1440 = vperm.slane %v1432, %v1439
    %v1441 = vrot.slane %v341, 4
    %v1442 = vsel %vm533, %v1441, %v245
    %v1443 = vrot.slane %v245, 4
    %v1444 = vsel %vm533, %v341, %v1443
    %v1446 = vunpack.c.l.s4 1983009808
    %v1447 = vunpack.c.0.s8 %v1446
    %v1448 = vperm.slane %v1442, %v1447
    %v1450 = vunpack.c.l.s4 1983009808
    %v1451 = vunpack.c.0.s8 %v1450
    %v1452 = vperm.slane %v1444, %v1451
    %v1453 = vrot.slane %v453, 4
    %v1454 = vsel %vm533, %v1453, %v189
    %v1455 = vrot.slane %v189, 4
    %v1456 = vsel %vm533, %v453, %v1455
    %v1458 = vunpack.c.l.s4 1983009808
    %v1459 = vunpack.c.0.s8 %v1458
    %v1460 = vperm.slane %v1454, %v1459
    %v1462 = vunpack.c.l.s4 1983009808
    %v1463 = vunpack.c.0.s8 %v1462
    %v1464 = vperm.slane %v1456, %v1463
    %v1465 = vrot.slane %v501, 4
    %v1466 = vsel %vm533, %v1465, %v405
    %v1467 = vrot.slane %v405, 4
    %v1468 = vsel %vm533, %v501, %v1467
    %v1470 = vunpack.c.l.s4 1983009808
    %v1471 = vunpack.c.0.s8 %v1470
    %v1472 = vperm.slane %v1466, %v1471
    %v1474 = vunpack.c.l.s4 1983009808
    %v1475 = vunpack.c.0.s8 %v1474
    %v1476 = vperm.slane %v1468, %v1475
    %v1477 = vrot.slane %v1448, 4
    %v1478 = vsel %vm533, %v1477, %v1436
    %v1479 = vrot.slane %v1436, 4
    %v1480 = vsel %vm533, %v1448, %v1479
    %v1482 = vunpack.c.l.s4 1934713408
    %v1483 = vunpack.c.0.s8 %v1482
    %v1484 = vperm.slane %v1478, %v1483
    %v1486 = vunpack.c.l.s4 1934713408
    %v1487 = vunpack.c.0.s8 %v1486
    %v1488 = vperm.slane %v1480, %v1487
    %v1489 = vrot.slane %v1452, 4
    %v1490 = vsel %vm533, %v1489, %v1440
    %v1491 = vrot.slane %v1440, 4
    %v1492 = vsel %vm533, %v1452, %v1491
    %v1494 = vunpack.c.l.s4 1934713408
    %v1495 = vunpack.c.0.s8 %v1494
    %v1496 = vperm.slane %v1490, %v1495
    %v1498 = vunpack.c.l.s4 1934713408
    %v1499 = vunpack.c.0.s8 %v1498
    %v1500 = vperm.slane %v1492, %v1499
    %v1501 = vrot.slane %v1472, 4
    %v1502 = vsel %vm533, %v1501, %v1460
    %v1503 = vrot.slane %v1460, 4
    %v1504 = vsel %vm533, %v1472, %v1503
    %v1506 = vunpack.c.l.s4 1934713408
    %v1507 = vunpack.c.0.s8 %v1506
    %v1508 = vperm.slane %v1502, %v1507
    %v1510 = vunpack.c.l.s4 1934713408
    %v1511 = vunpack.c.0.s8 %v1510
    %v1512 = vperm.slane %v1504, %v1511
    %v1513 = vrot.slane %v1476, 4
    %v1514 = vsel %vm533, %v1513, %v1464
    %v1515 = vrot.slane %v1464, 4
    %v1516 = vsel %vm533, %v1476, %v1515
    %v1518 = vunpack.c.l.s4 1934713408
    %v1519 = vunpack.c.0.s8 %v1518
    %v1520 = vperm.slane %v1514, %v1519
    %v1522 = vunpack.c.l.s4 1934713408
    %v1523 = vunpack.c.0.s8 %v1522
    %v1524 = vperm.slane %v1516, %v1523
    %v1525 = vrot.slane %v1508, 4
    %v1526 = vsel %vm533, %v1525, %v1484
    %v1527 = vrot.slane %v1484, 4
    %v1528 = vsel %vm533, %v1508, %v1527
    %v1529 = vrot.slane %v1512, 4
    %v1530 = vsel %vm533, %v1529, %v1488
    %v1531 = vrot.slane %v1488, 4
    %v1532 = vsel %vm533, %v1512, %v1531
    %v1533 = vrot.slane %v1520, 4
    %v1534 = vsel %vm533, %v1533, %v1496
    %v1535 = vrot.slane %v1496, 4
    %v1536 = vsel %vm533, %v1520, %v1535
    %v1537 = vrot.slane %v1524, 4
    %v1538 = vsel %vm533, %v1537, %v1500
    %v1539 = vrot.slane %v1500, 4
    %v1540 = vsel %vm533, %v1524, %v1539
    %v1541 = vrot.slane %v295, 4
    %v1542 = vsel %vm533, %v1541, %v127
    %v1543 = vrot.slane %v127, 4
    %v1544 = vsel %vm533, %v295, %v1543
    %v1546 = vunpack.c.l.s4 1983009808
    %v1547 = vunpack.c.0.s8 %v1546
    %v1548 = vperm.slane %v1542, %v1547
    %v1550 = vunpack.c.l.s4 1983009808
    %v1551 = vunpack.c.0.s8 %v1550
    %v1552 = vperm.slane %v1544, %v1551
    %v1553 = vrot.slane %v343, 4
    %v1554 = vsel %vm533, %v1553, %v247
    %v1555 = vrot.slane %v247, 4
    %v1556 = vsel %vm533, %v343, %v1555
    %v1558 = vunpack.c.l.s4 1983009808
    %v1559 = vunpack.c.0.s8 %v1558
    %v1560 = vperm.slane %v1554, %v1559
    %v1562 = vunpack.c.l.s4 1983009808
    %v1563 = vunpack.c.0.s8 %v1562
    %v1564 = vperm.slane %v1556, %v1563
    %v1565 = vrot.slane %v455, 4
    %v1566 = vsel %vm533, %v1565, %v192
    %v1567 = vrot.slane %v192, 4
    %v1568 = vsel %vm533, %v455, %v1567
    %v1570 = vunpack.c.l.s4 1983009808
    %v1571 = vunpack.c.0.s8 %v1570
    %v1572 = vperm.slane %v1566, %v1571
    %v1574 = vunpack.c.l.s4 1983009808
    %v1575 = vunpack.c.0.s8 %v1574
    %v1576 = vperm.slane %v1568, %v1575
    %v1577 = vrot.slane %v503, 4
    %v1578 = vsel %vm533, %v1577, %v407
    %v1579 = vrot.slane %v407, 4
    %v1580 = vsel %vm533, %v503, %v1579
    %v1582 = vunpack.c.l.s4 1983009808
    %v1583 = vunpack.c.0.s8 %v1582
    %v1584 = vperm.slane %v1578, %v1583
    %v1586 = vunpack.c.l.s4 1983009808
    %v1587 = vunpack.c.0.s8 %v1586
    %v1588 = vperm.slane %v1580, %v1587
    %v1589 = vrot.slane %v1560, 4
    %v1590 = vsel %vm533, %v1589, %v1548
    %v1591 = vrot.slane %v1548, 4
    %v1592 = vsel %vm533, %v1560, %v1591
    %v1594 = vunpack.c.l.s4 1934713408
    %v1595 = vunpack.c.0.s8 %v1594
    %v1596 = vperm.slane %v1590, %v1595
    %v1598 = vunpack.c.l.s4 1934713408
    %v1599 = vunpack.c.0.s8 %v1598
    %v1600 = vperm.slane %v1592, %v1599
    %v1601 = vrot.slane %v1564, 4
    %v1602 = vsel %vm533, %v1601, %v1552
    %v1603 = vrot.slane %v1552, 4
    %v1604 = vsel %vm533, %v1564, %v1603
    %v1606 = vunpack.c.l.s4 1934713408
    %v1607 = vunpack.c.0.s8 %v1606
    %v1608 = vperm.slane %v1602, %v1607
    %v1610 = vunpack.c.l.s4 1934713408
    %v1611 = vunpack.c.0.s8 %v1610
    %v1612 = vperm.slane %v1604, %v1611
    %v1613 = vrot.slane %v1584, 4
    %v1614 = vsel %vm533, %v1613, %v1572
    %v1615 = vrot.slane %v1572, 4
    %v1616 = vsel %vm533, %v1584, %v1615
    %v1618 = vunpack.c.l.s4 1934713408
    %v1619 = vunpack.c.0.s8 %v1618
    %v1620 = vperm.slane %v1614, %v1619
    %v1622 = vunpack.c.l.s4 1934713408
    %v1623 = vunpack.c.0.s8 %v1622
    %v1624 = vperm.slane %v1616, %v1623
    %v1625 = vrot.slane %v1588, 4
    %v1626 = vsel %vm533, %v1625, %v1576
    %v1627 = vrot.slane %v1576, 4
    %v1628 = vsel %vm533, %v1588, %v1627
    %v1630 = vunpack.c.l.s4 1934713408
    %v1631 = vunpack.c.0.s8 %v1630
    %v1632 = vperm.slane %v1626, %v1631
    %v1634 = vunpack.c.l.s4 1934713408
    %v1635 = vunpack.c.0.s8 %v1634
    %v1636 = vperm.slane %v1628, %v1635
    %v1637 = vrot.slane %v1620, 4
    %v1638 = vsel %vm533, %v1637, %v1596
    %v1639 = vrot.slane %v1596, 4
    %v1640 = vsel %vm533, %v1620, %v1639
    %v1641 = vrot.slane %v1624, 4
    %v1642 = vsel %vm533, %v1641, %v1600
    %v1643 = vrot.slane %v1600, 4
    %v1644 = vsel %vm533, %v1624, %v1643
    %v1645 = vrot.slane %v1632, 4
    %v1646 = vsel %vm533, %v1645, %v1608
    %v1647 = vrot.slane %v1608, 4
    %v1648 = vsel %vm533, %v1632, %v1647
    %v1649 = vrot.slane %v1636, 4
    %v1650 = vsel %vm533, %v1649, %v1612
    %v1651 = vrot.slane %v1612, 4
    %v1652 = vsel %vm533, %v1636, %v1651
    %v1653 = vrot.slane %v297, 4
    %v1654 = vsel %vm533, %v1653, %v130
    %v1655 = vrot.slane %v130, 4
    %v1656 = vsel %vm533, %v297, %v1655
    %v1658 = vunpack.c.l.s4 1983009808
    %v1659 = vunpack.c.0.s8 %v1658
    %v1660 = vperm.slane %v1654, %v1659
    %v1662 = vunpack.c.l.s4 1983009808
    %v1663 = vunpack.c.0.s8 %v1662
    %v1664 = vperm.slane %v1656, %v1663
    %v1665 = vrot.slane %v345, 4
    %v1666 = vsel %vm533, %v1665, %v249
    %v1667 = vrot.slane %v249, 4
    %v1668 = vsel %vm533, %v345, %v1667
    %v1670 = vunpack.c.l.s4 1983009808
    %v1671 = vunpack.c.0.s8 %v1670
    %v1672 = vperm.slane %v1666, %v1671
    %v1674 = vunpack.c.l.s4 1983009808
    %v1675 = vunpack.c.0.s8 %v1674
    %v1676 = vperm.slane %v1668, %v1675
    %v1677 = vrot.slane %v457, 4
    %v1678 = vsel %vm533, %v1677, %v195
    %v1679 = vrot.slane %v195, 4
    %v1680 = vsel %vm533, %v457, %v1679
    %v1682 = vunpack.c.l.s4 1983009808
    %v1683 = vunpack.c.0.s8 %v1682
    %v1684 = vperm.slane %v1678, %v1683
    %v1686 = vunpack.c.l.s4 1983009808
    %v1687 = vunpack.c.0.s8 %v1686
    %v1688 = vperm.slane %v1680, %v1687
    %v1689 = vrot.slane %v505, 4
    %v1690 = vsel %vm533, %v1689, %v409
    %v1691 = vrot.slane %v409, 4
    %v1692 = vsel %vm533, %v505, %v1691
    %v1694 = vunpack.c.l.s4 1983009808
    %v1695 = vunpack.c.0.s8 %v1694
    %v1696 = vperm.slane %v1690, %v1695
    %v1698 = vunpack.c.l.s4 1983009808
    %v1699 = vunpack.c.0.s8 %v1698
    %v1700 = vperm.slane %v1692, %v1699
    %v1701 = vrot.slane %v1672, 4
    %v1702 = vsel %vm533, %v1701, %v1660
    %v1703 = vrot.slane %v1660, 4
    %v1704 = vsel %vm533, %v1672, %v1703
    %v1706 = vunpack.c.l.s4 1934713408
    %v1707 = vunpack.c.0.s8 %v1706
    %v1708 = vperm.slane %v1702, %v1707
    %v1710 = vunpack.c.l.s4 1934713408
    %v1711 = vunpack.c.0.s8 %v1710
    %v1712 = vperm.slane %v1704, %v1711
    %v1713 = vrot.slane %v1676, 4
    %v1714 = vsel %vm533, %v1713, %v1664
    %v1715 = vrot.slane %v1664, 4
    %v1716 = vsel %vm533, %v1676, %v1715
    %v1718 = vunpack.c.l.s4 1934713408
    %v1719 = vunpack.c.0.s8 %v1718
    %v1720 = vperm.slane %v1714, %v1719
    %v1722 = vunpack.c.l.s4 1934713408
    %v1723 = vunpack.c.0.s8 %v1722
    %v1724 = vperm.slane %v1716, %v1723
    %v1725 = vrot.slane %v1696, 4
    %v1726 = vsel %vm533, %v1725, %v1684
    %v1727 = vrot.slane %v1684, 4
    %v1728 = vsel %vm533, %v1696, %v1727
    %v1730 = vunpack.c.l.s4 1934713408
    %v1731 = vunpack.c.0.s8 %v1730
    %v1732 = vperm.slane %v1726, %v1731
    %v1734 = vunpack.c.l.s4 1934713408
    %v1735 = vunpack.c.0.s8 %v1734
    %v1736 = vperm.slane %v1728, %v1735
    %v1737 = vrot.slane %v1700, 4
    %v1738 = vsel %vm533, %v1737, %v1688
    %v1739 = vrot.slane %v1688, 4
    %v1740 = vsel %vm533, %v1700, %v1739
    %v1742 = vunpack.c.l.s4 1934713408
    %v1743 = vunpack.c.0.s8 %v1742
    %v1744 = vperm.slane %v1738, %v1743
    %v1746 = vunpack.c.l.s4 1934713408
    %v1747 = vunpack.c.0.s8 %v1746
    %v1748 = vperm.slane %v1740, %v1747
    %v1749 = vrot.slane %v1732, 4
    %v1750 = vsel %vm533, %v1749, %v1708
    %v1751 = vrot.slane %v1708, 4
    %v1752 = vsel %vm533, %v1732, %v1751
    %v1753 = vrot.slane %v1736, 4
    %v1754 = vsel %vm533, %v1753, %v1712
    %v1755 = vrot.slane %v1712, 4
    %v1756 = vsel %vm533, %v1736, %v1755
    %v1757 = vrot.slane %v1744, 4
    %v1758 = vsel %vm533, %v1757, %v1720
    %v1759 = vrot.slane %v1720, 4
    %v1760 = vsel %vm533, %v1744, %v1759
    %v1761 = vrot.slane %v1748, 4
    %v1762 = vsel %vm533, %v1761, %v1724
    %v1763 = vrot.slane %v1724, 4
    %v1764 = vsel %vm533, %v1748, %v1763
    %v1765 = vrot.slane %v299, 4
    %v1766 = vsel %vm533, %v1765, %v133
    %v1767 = vrot.slane %v133, 4
    %v1768 = vsel %vm533, %v299, %v1767
    %v1770 = vunpack.c.l.s4 1983009808
    %v1771 = vunpack.c.0.s8 %v1770
    %v1772 = vperm.slane %v1766, %v1771
    %v1774 = vunpack.c.l.s4 1983009808
    %v1775 = vunpack.c.0.s8 %v1774
    %v1776 = vperm.slane %v1768, %v1775
    %v1777 = vrot.slane %v347, 4
    %v1778 = vsel %vm533, %v1777, %v251
    %v1779 = vrot.slane %v251, 4
    %v1780 = vsel %vm533, %v347, %v1779
    %v1782 = vunpack.c.l.s4 1983009808
    %v1783 = vunpack.c.0.s8 %v1782
    %v1784 = vperm.slane %v1778, %v1783
    %v1786 = vunpack.c.l.s4 1983009808
    %v1787 = vunpack.c.0.s8 %v1786
    %v1788 = vperm.slane %v1780, %v1787
    %v1789 = vrot.slane %v459, 4
    %v1790 = vsel %vm533, %v1789, %v198
    %v1791 = vrot.slane %v198, 4
    %v1792 = vsel %vm533, %v459, %v1791
    %v1794 = vunpack.c.l.s4 1983009808
    %v1795 = vunpack.c.0.s8 %v1794
    %v1796 = vperm.slane %v1790, %v1795
    %v1798 = vunpack.c.l.s4 1983009808
    %v1799 = vunpack.c.0.s8 %v1798
    %v1800 = vperm.slane %v1792, %v1799
    %v1801 = vrot.slane %v507, 4
    %v1802 = vsel %vm533, %v1801, %v411
    %v1803 = vrot.slane %v411, 4
    %v1804 = vsel %vm533, %v507, %v1803
    %v1806 = vunpack.c.l.s4 1983009808
    %v1807 = vunpack.c.0.s8 %v1806
    %v1808 = vperm.slane %v1802, %v1807
    %v1810 = vunpack.c.l.s4 1983009808
    %v1811 = vunpack.c.0.s8 %v1810
    %v1812 = vperm.slane %v1804, %v1811
    %v1813 = vrot.slane %v1784, 4
    %v1814 = vsel %vm533, %v1813, %v1772
    %v1815 = vrot.slane %v1772, 4
    %v1816 = vsel %vm533, %v1784, %v1815
    %v1818 = vunpack.c.l.s4 1934713408
    %v1819 = vunpack.c.0.s8 %v1818
    %v1820 = vperm.slane %v1814, %v1819
    %v1822 = vunpack.c.l.s4 1934713408
    %v1823 = vunpack.c.0.s8 %v1822
    %v1824 = vperm.slane %v1816, %v1823
    %v1825 = vrot.slane %v1788, 4
    %v1826 = vsel %vm533, %v1825, %v1776
    %v1827 = vrot.slane %v1776, 4
    %v1828 = vsel %vm533, %v1788, %v1827
    %v1830 = vunpack.c.l.s4 1934713408
    %v1831 = vunpack.c.0.s8 %v1830
    %v1832 = vperm.slane %v1826, %v1831
    %v1834 = vunpack.c.l.s4 1934713408
    %v1835 = vunpack.c.0.s8 %v1834
    %v1836 = vperm.slane %v1828, %v1835
    %v1837 = vrot.slane %v1808, 4
    %v1838 = vsel %vm533, %v1837, %v1796
    %v1839 = vrot.slane %v1796, 4
    %v1840 = vsel %vm533, %v1808, %v1839
    %v1842 = vunpack.c.l.s4 1934713408
    %v1843 = vunpack.c.0.s8 %v1842
    %v1844 = vperm.slane %v1838, %v1843
    %v1846 = vunpack.c.l.s4 1934713408
    %v1847 = vunpack.c.0.s8 %v1846
    %v1848 = vperm.slane %v1840, %v1847
    %v1849 = vrot.slane %v1812, 4
    %v1850 = vsel %vm533, %v1849, %v1800
    %v1851 = vrot.slane %v1800, 4
    %v1852 = vsel %vm533, %v1812, %v1851
    %v1854 = vunpack.c.l.s4 1934713408
    %v1855 = vunpack.c.0.s8 %v1854
    %v1856 = vperm.slane %v1850, %v1855
    %v1858 = vunpack.c.l.s4 1934713408
    %v1859 = vunpack.c.0.s8 %v1858
    %v1860 = vperm.slane %v1852, %v1859
    %v1861 = vrot.slane %v1844, 4
    %v1862 = vsel %vm533, %v1861, %v1820
    %v1863 = vrot.slane %v1820, 4
    %v1864 = vsel %vm533, %v1844, %v1863
    %v1865 = vrot.slane %v1848, 4
    %v1866 = vsel %vm533, %v1865, %v1824
    %v1867 = vrot.slane %v1824, 4
    %v1868 = vsel %vm533, %v1848, %v1867
    %v1869 = vrot.slane %v1856, 4
    %v1870 = vsel %vm533, %v1869, %v1832
    %v1871 = vrot.slane %v1832, 4
    %v1872 = vsel %vm533, %v1856, %v1871
    %v1873 = vrot.slane %v1860, 4
    %v1874 = vsel %vm533, %v1873, %v1836
    %v1875 = vrot.slane %v1836, 4
    %v1876 = vsel %vm533, %v1860, %v1875
    %v1877 = vrot.slane %v301, 4
    %v1878 = vsel %vm533, %v1877, %v136
    %v1879 = vrot.slane %v136, 4
    %v1880 = vsel %vm533, %v301, %v1879
    %v1882 = vunpack.c.l.s4 1983009808
    %v1883 = vunpack.c.0.s8 %v1882
    %v1884 = vperm.slane %v1878, %v1883
    %v1886 = vunpack.c.l.s4 1983009808
    %v1887 = vunpack.c.0.s8 %v1886
    %v1888 = vperm.slane %v1880, %v1887
    %v1889 = vrot.slane %v349, 4
    %v1890 = vsel %vm533, %v1889, %v253
    %v1891 = vrot.slane %v253, 4
    %v1892 = vsel %vm533, %v349, %v1891
    %v1894 = vunpack.c.l.s4 1983009808
    %v1895 = vunpack.c.0.s8 %v1894
    %v1896 = vperm.slane %v1890, %v1895
    %v1898 = vunpack.c.l.s4 1983009808
    %v1899 = vunpack.c.0.s8 %v1898
    %v1900 = vperm.slane %v1892, %v1899
    %v1901 = vrot.slane %v461, 4
    %v1902 = vsel %vm533, %v1901, %v201
    %v1903 = vrot.slane %v201, 4
    %v1904 = vsel %vm533, %v461, %v1903
    %v1906 = vunpack.c.l.s4 1983009808
    %v1907 = vunpack.c.0.s8 %v1906
    %v1908 = vperm.slane %v1902, %v1907
    %v1910 = vunpack.c.l.s4 1983009808
    %v1911 = vunpack.c.0.s8 %v1910
    %v1912 = vperm.slane %v1904, %v1911
    %v1913 = vrot.slane %v509, 4
    %v1914 = vsel %vm533, %v1913, %v413
    %v1915 = vrot.slane %v413, 4
    %v1916 = vsel %vm533, %v509, %v1915
    %v1918 = vunpack.c.l.s4 1983009808
    %v1919 = vunpack.c.0.s8 %v1918
    %v1920 = vperm.slane %v1914, %v1919
    %v1922 = vunpack.c.l.s4 1983009808
    %v1923 = vunpack.c.0.s8 %v1922
    %v1924 = vperm.slane %v1916, %v1923
    %v1925 = vrot.slane %v1896, 4
    %v1926 = vsel %vm533, %v1925, %v1884
    %v1927 = vrot.slane %v1884, 4
    %v1928 = vsel %vm533, %v1896, %v1927
    %v1930 = vunpack.c.l.s4 1934713408
    %v1931 = vunpack.c.0.s8 %v1930
    %v1932 = vperm.slane %v1926, %v1931
    %v1934 = vunpack.c.l.s4 1934713408
    %v1935 = vunpack.c.0.s8 %v1934
    %v1936 = vperm.slane %v1928, %v1935
    %v1937 = vrot.slane %v1900, 4
    %v1938 = vsel %vm533, %v1937, %v1888
    %v1939 = vrot.slane %v1888, 4
    %v1940 = vsel %vm533, %v1900, %v1939
    %v1942 = vunpack.c.l.s4 1934713408
    %v1943 = vunpack.c.0.s8 %v1942
    %v1944 = vperm.slane %v1938, %v1943
    %v1946 = vunpack.c.l.s4 1934713408
    %v1947 = vunpack.c.0.s8 %v1946
    %v1948 = vperm.slane %v1940, %v1947
    %v1949 = vrot.slane %v1920, 4
    %v1950 = vsel %vm533, %v1949, %v1908
    %v1951 = vrot.slane %v1908, 4
    %v1952 = vsel %vm533, %v1920, %v1951
    %v1954 = vunpack.c.l.s4 1934713408
    %v1955 = vunpack.c.0.s8 %v1954
    %v1956 = vperm.slane %v1950, %v1955
    %v1958 = vunpack.c.l.s4 1934713408
    %v1959 = vunpack.c.0.s8 %v1958
    %v1960 = vperm.slane %v1952, %v1959
    %v1961 = vrot.slane %v1924, 4
    %v1962 = vsel %vm533, %v1961, %v1912
    %v1963 = vrot.slane %v1912, 4
    %v1964 = vsel %vm533, %v1924, %v1963
    %v1966 = vunpack.c.l.s4 1934713408
    %v1967 = vunpack.c.0.s8 %v1966
    %v1968 = vperm.slane %v1962, %v1967
    %v1970 = vunpack.c.l.s4 1934713408
    %v1971 = vunpack.c.0.s8 %v1970
    %v1972 = vperm.slane %v1964, %v1971
    %v1973 = vrot.slane %v1956, 4
    %v1974 = vsel %vm533, %v1973, %v1932
    %v1975 = vrot.slane %v1932, 4
    %v1976 = vsel %vm533, %v1956, %v1975
    %v1977 = vrot.slane %v1960, 4
    %v1978 = vsel %vm533, %v1977, %v1936
    %v1979 = vrot.slane %v1936, 4
    %v1980 = vsel %vm533, %v1960, %v1979
    %v1981 = vrot.slane %v1968, 4
    %v1982 = vsel %vm533, %v1981, %v1944
    %v1983 = vrot.slane %v1944, 4
    %v1984 = vsel %vm533, %v1968, %v1983
    %v1985 = vrot.slane %v1972, 4
    %v1986 = vsel %vm533, %v1985, %v1948
    %v1987 = vrot.slane %v1948, 4
    %v1988 = vsel %vm533, %v1972, %v1987
    %v1989 = vrot.slane %v303, 4
    %v1990 = vsel %vm533, %v1989, %v139
    %v1991 = vrot.slane %v139, 4
    %v1992 = vsel %vm533, %v303, %v1991
    %v1994 = vunpack.c.l.s4 1983009808
    %v1995 = vunpack.c.0.s8 %v1994
    %v1996 = vperm.slane %v1990, %v1995
    %v1998 = vunpack.c.l.s4 1983009808
    %v1999 = vunpack.c.0.s8 %v1998
    %v2000 = vperm.slane %v1992, %v1999
    %v2001 = vrot.slane %v351, 4
    %v2002 = vsel %vm533, %v2001, %v255
    %v2003 = vrot.slane %v255, 4
    %v2004 = vsel %vm533, %v351, %v2003
    %v2006 = vunpack.c.l.s4 1983009808
    %v2007 = vunpack.c.0.s8 %v2006
    %v2008 = vperm.slane %v2002, %v2007
    %v2010 = vunpack.c.l.s4 1983009808
    %v2011 = vunpack.c.0.s8 %v2010
    %v2012 = vperm.slane %v2004, %v2011
    %v2013 = vrot.slane %v463, 4
    %v2014 = vsel %vm533, %v2013, %v204
    %v2015 = vrot.slane %v204, 4
    %v2016 = vsel %vm533, %v463, %v2015
    %v2018 = vunpack.c.l.s4 1983009808
    %v2019 = vunpack.c.0.s8 %v2018
    %v2020 = vperm.slane %v2014, %v2019
    %v2022 = vunpack.c.l.s4 1983009808
    %v2023 = vunpack.c.0.s8 %v2022
    %v2024 = vperm.slane %v2016, %v2023
    %v2025 = vrot.slane %v511, 4
    %v2026 = vsel %vm533, %v2025, %v415
    %v2027 = vrot.slane %v415, 4
    %v2028 = vsel %vm533, %v511, %v2027
    %v2030 = vunpack.c.l.s4 1983009808
    %v2031 = vunpack.c.0.s8 %v2030
    %v2032 = vperm.slane %v2026, %v2031
    %v2034 = vunpack.c.l.s4 1983009808
    %v2035 = vunpack.c.0.s8 %v2034
    %v2036 = vperm.slane %v2028, %v2035
    %v2037 = vrot.slane %v2008, 4
    %v2038 = vsel %vm533, %v2037, %v1996
    %v2039 = vrot.slane %v1996, 4
    %v2040 = vsel %vm533, %v2008, %v2039
    %v2042 = vunpack.c.l.s4 1934713408
    %v2043 = vunpack.c.0.s8 %v2042
    %v2044 = vperm.slane %v2038, %v2043
    %v2046 = vunpack.c.l.s4 1934713408
    %v2047 = vunpack.c.0.s8 %v2046
    %v2048 = vperm.slane %v2040, %v2047
    %v2049 = vrot.slane %v2012, 4
    %v2050 = vsel %vm533, %v2049, %v2000
    %v2051 = vrot.slane %v2000, 4
    %v2052 = vsel %vm533, %v2012, %v2051
    %v2054 = vunpack.c.l.s4 1934713408
    %v2055 = vunpack.c.0.s8 %v2054
    %v2056 = vperm.slane %v2050, %v2055
    %v2058 = vunpack.c.l.s4 1934713408
    %v2059 = vunpack.c.0.s8 %v2058
    %v2060 = vperm.slane %v2052, %v2059
    %v2061 = vrot.slane %v2032, 4
    %v2062 = vsel %vm533, %v2061, %v2020
    %v2063 = vrot.slane %v2020, 4
    %v2064 = vsel %vm533, %v2032, %v2063
    %v2066 = vunpack.c.l.s4 1934713408
    %v2067 = vunpack.c.0.s8 %v2066
    %v2068 = vperm.slane %v2062, %v2067
    %v2070 = vunpack.c.l.s4 1934713408
    %v2071 = vunpack.c.0.s8 %v2070
    %v2072 = vperm.slane %v2064, %v2071
    %v2073 = vrot.slane %v2036, 4
    %v2074 = vsel %vm533, %v2073, %v2024
    %v2075 = vrot.slane %v2024, 4
    %v2076 = vsel %vm533, %v2036, %v2075
    %v2078 = vunpack.c.l.s4 1934713408
    %v2079 = vunpack.c.0.s8 %v2078
    %v2080 = vperm.slane %v2074, %v2079
    %v2082 = vunpack.c.l.s4 1934713408
    %v2083 = vunpack.c.0.s8 %v2082
    %v2084 = vperm.slane %v2076, %v2083
    %v2085 = vrot.slane %v2068, 4
    %v2086 = vsel %vm533, %v2085, %v2044
    %v2087 = vrot.slane %v2044, 4
    %v2088 = vsel %vm533, %v2068, %v2087
    %v2089 = vrot.slane %v2072, 4
    %v2090 = vsel %vm533, %v2089, %v2048
    %v2091 = vrot.slane %v2048, 4
    %v2092 = vsel %vm533, %v2072, %v2091
    %v2093 = vrot.slane %v2080, 4
    %v2094 = vsel %vm533, %v2093, %v2056
    %v2095 = vrot.slane %v2056, 4
    %v2096 = vsel %vm533, %v2080, %v2095
    %v2097 = vrot.slane %v2084, 4
    %v2098 = vsel %vm533, %v2097, %v2060
    %v2099 = vrot.slane %v2060, 4
    %v2100 = vsel %vm533, %v2084, %v2099
    %v2101 = vrot.slane %v305, 4
    %v2102 = vsel %vm533, %v2101, %v142
    %v2103 = vrot.slane %v142, 4
    %v2104 = vsel %vm533, %v305, %v2103
    %v2106 = vunpack.c.l.s4 1983009808
    %v2107 = vunpack.c.0.s8 %v2106
    %v2108 = vperm.slane %v2102, %v2107
    %v2110 = vunpack.c.l.s4 1983009808
    %v2111 = vunpack.c.0.s8 %v2110
    %v2112 = vperm.slane %v2104, %v2111
    %v2113 = vrot.slane %v353, 4
    %v2114 = vsel %vm533, %v2113, %v257
    %v2115 = vrot.slane %v257, 4
    %v2116 = vsel %vm533, %v353, %v2115
    %v2118 = vunpack.c.l.s4 1983009808
    %v2119 = vunpack.c.0.s8 %v2118
    %v2120 = vperm.slane %v2114, %v2119
    %v2122 = vunpack.c.l.s4 1983009808
    %v2123 = vunpack.c.0.s8 %v2122
    %v2124 = vperm.slane %v2116, %v2123
    %v2125 = vrot.slane %v465, 4
    %v2126 = vsel %vm533, %v2125, %v207
    %v2127 = vrot.slane %v207, 4
    %v2128 = vsel %vm533, %v465, %v2127
    %v2130 = vunpack.c.l.s4 1983009808
    %v2131 = vunpack.c.0.s8 %v2130
    %v2132 = vperm.slane %v2126, %v2131
    %v2134 = vunpack.c.l.s4 1983009808
    %v2135 = vunpack.c.0.s8 %v2134
    %v2136 = vperm.slane %v2128, %v2135
    %v2137 = vrot.slane %v513, 4
    %v2138 = vsel %vm533, %v2137, %v417
    %v2139 = vrot.slane %v417, 4
    %v2140 = vsel %vm533, %v513, %v2139
    %v2142 = vunpack.c.l.s4 1983009808
    %v2143 = vunpack.c.0.s8 %v2142
    %v2144 = vperm.slane %v2138, %v2143
    %v2146 = vunpack.c.l.s4 1983009808
    %v2147 = vunpack.c.0.s8 %v2146
    %v2148 = vperm.slane %v2140, %v2147
    %v2149 = vrot.slane %v2120, 4
    %v2150 = vsel %vm533, %v2149, %v2108
    %v2151 = vrot.slane %v2108, 4
    %v2152 = vsel %vm533, %v2120, %v2151
    %v2154 = vunpack.c.l.s4 1934713408
    %v2155 = vunpack.c.0.s8 %v2154
    %v2156 = vperm.slane %v2150, %v2155
    %v2158 = vunpack.c.l.s4 1934713408
    %v2159 = vunpack.c.0.s8 %v2158
    %v2160 = vperm.slane %v2152, %v2159
    %v2161 = vrot.slane %v2124, 4
    %v2162 = vsel %vm533, %v2161, %v2112
    %v2163 = vrot.slane %v2112, 4
    %v2164 = vsel %vm533, %v2124, %v2163
    %v2166 = vunpack.c.l.s4 1934713408
    %v2167 = vunpack.c.0.s8 %v2166
    %v2168 = vperm.slane %v2162, %v2167
    %v2170 = vunpack.c.l.s4 1934713408
    %v2171 = vunpack.c.0.s8 %v2170
    %v2172 = vperm.slane %v2164, %v2171
    %v2173 = vrot.slane %v2144, 4
    %v2174 = vsel %vm533, %v2173, %v2132
    %v2175 = vrot.slane %v2132, 4
    %v2176 = vsel %vm533, %v2144, %v2175
    %v2178 = vunpack.c.l.s4 1934713408
    %v2179 = vunpack.c.0.s8 %v2178
    %v2180 = vperm.slane %v2174, %v2179
    %v2182 = vunpack.c.l.s4 1934713408
    %v2183 = vunpack.c.0.s8 %v2182
    %v2184 = vperm.slane %v2176, %v2183
    %v2185 = vrot.slane %v2148, 4
    %v2186 = vsel %vm533, %v2185, %v2136
    %v2187 = vrot.slane %v2136, 4
    %v2188 = vsel %vm533, %v2148, %v2187
    %v2190 = vunpack.c.l.s4 1934713408
    %v2191 = vunpack.c.0.s8 %v2190
    %v2192 = vperm.slane %v2186, %v2191
    %v2194 = vunpack.c.l.s4 1934713408
    %v2195 = vunpack.c.0.s8 %v2194
    %v2196 = vperm.slane %v2188, %v2195
    %v2197 = vrot.slane %v2180, 4
    %v2198 = vsel %vm533, %v2197, %v2156
    %v2199 = vrot.slane %v2156, 4
    %v2200 = vsel %vm533, %v2180, %v2199
    %v2201 = vrot.slane %v2184, 4
    %v2202 = vsel %vm533, %v2201, %v2160
    %v2203 = vrot.slane %v2160, 4
    %v2204 = vsel %vm533, %v2184, %v2203
    %v2205 = vrot.slane %v2192, 4
    %v2206 = vsel %vm533, %v2205, %v2168
    %v2207 = vrot.slane %v2168, 4
    %v2208 = vsel %vm533, %v2192, %v2207
    %v2209 = vrot.slane %v2196, 4
    %v2210 = vsel %vm533, %v2209, %v2172
    %v2211 = vrot.slane %v2172, 4
    %v2212 = vsel %vm533, %v2196, %v2211
    %v2213 = vrot.slane %v307, 4
    %v2214 = vsel %vm533, %v2213, %v145
    %v2215 = vrot.slane %v145, 4
    %v2216 = vsel %vm533, %v307, %v2215
    %v2218 = vunpack.c.l.s4 1983009808
    %v2219 = vunpack.c.0.s8 %v2218
    %v2220 = vperm.slane %v2214, %v2219
    %v2222 = vunpack.c.l.s4 1983009808
    %v2223 = vunpack.c.0.s8 %v2222
    %v2224 = vperm.slane %v2216, %v2223
    %v2225 = vrot.slane %v355, 4
    %v2226 = vsel %vm533, %v2225, %v259
    %v2227 = vrot.slane %v259, 4
    %v2228 = vsel %vm533, %v355, %v2227
    %v2230 = vunpack.c.l.s4 1983009808
    %v2231 = vunpack.c.0.s8 %v2230
    %v2232 = vperm.slane %v2226, %v2231
    %v2234 = vunpack.c.l.s4 1983009808
    %v2235 = vunpack.c.0.s8 %v2234
    %v2236 = vperm.slane %v2228, %v2235
    %v2237 = vrot.slane %v467, 4
    %v2238 = vsel %vm533, %v2237, %v210
    %v2239 = vrot.slane %v210, 4
    %v2240 = vsel %vm533, %v467, %v2239
    %v2242 = vunpack.c.l.s4 1983009808
    %v2243 = vunpack.c.0.s8 %v2242
    %v2244 = vperm.slane %v2238, %v2243
    %v2246 = vunpack.c.l.s4 1983009808
    %v2247 = vunpack.c.0.s8 %v2246
    %v2248 = vperm.slane %v2240, %v2247
    %v2249 = vrot.slane %v515, 4
    %v2250 = vsel %vm533, %v2249, %v419
    %v2251 = vrot.slane %v419, 4
    %v2252 = vsel %vm533, %v515, %v2251
    %v2254 = vunpack.c.l.s4 1983009808
    %v2255 = vunpack.c.0.s8 %v2254
    %v2256 = vperm.slane %v2250, %v2255
    %v2258 = vunpack.c.l.s4 1983009808
    %v2259 = vunpack.c.0.s8 %v2258
    %v2260 = vperm.slane %v2252, %v2259
    %v2261 = vrot.slane %v2232, 4
    %v2262 = vsel %vm533, %v2261, %v2220
    %v2263 = vrot.slane %v2220, 4
    %v2264 = vsel %vm533, %v2232, %v2263
    %v2266 = vunpack.c.l.s4 1934713408
    %v2267 = vunpack.c.0.s8 %v2266
    %v2268 = vperm.slane %v2262, %v2267
    %v2270 = vunpack.c.l.s4 1934713408
    %v2271 = vunpack.c.0.s8 %v2270
    %v2272 = vperm.slane %v2264, %v2271
    %v2273 = vrot.slane %v2236, 4
    %v2274 = vsel %vm533, %v2273, %v2224
    %v2275 = vrot.slane %v2224, 4
    %v2276 = vsel %vm533, %v2236, %v2275
    %v2278 = vunpack.c.l.s4 1934713408
    %v2279 = vunpack.c.0.s8 %v2278
    %v2280 = vperm.slane %v2274, %v2279
    %v2282 = vunpack.c.l.s4 1934713408
    %v2283 = vunpack.c.0.s8 %v2282
    %v2284 = vperm.slane %v2276, %v2283
    %v2285 = vrot.slane %v2256, 4
    %v2286 = vsel %vm533, %v2285, %v2244
    %v2287 = vrot.slane %v2244, 4
    %v2288 = vsel %vm533, %v2256, %v2287
    %v2290 = vunpack.c.l.s4 1934713408
    %v2291 = vunpack.c.0.s8 %v2290
    %v2292 = vperm.slane %v2286, %v2291
    %v2294 = vunpack.c.l.s4 1934713408
    %v2295 = vunpack.c.0.s8 %v2294
    %v2296 = vperm.slane %v2288, %v2295
    %v2297 = vrot.slane %v2260, 4
    %v2298 = vsel %vm533, %v2297, %v2248
    %v2299 = vrot.slane %v2248, 4
    %v2300 = vsel %vm533, %v2260, %v2299
    %v2302 = vunpack.c.l.s4 1934713408
    %v2303 = vunpack.c.0.s8 %v2302
    %v2304 = vperm.slane %v2298, %v2303
    %v2306 = vunpack.c.l.s4 1934713408
    %v2307 = vunpack.c.0.s8 %v2306
    %v2308 = vperm.slane %v2300, %v2307
    %v2309 = vrot.slane %v2292, 4
    %v2310 = vsel %vm533, %v2309, %v2268
    %v2311 = vrot.slane %v2268, 4
    %v2312 = vsel %vm533, %v2292, %v2311
    %v2313 = vrot.slane %v2296, 4
    %v2314 = vsel %vm533, %v2313, %v2272
    %v2315 = vrot.slane %v2272, 4
    %v2316 = vsel %vm533, %v2296, %v2315
    %v2317 = vrot.slane %v2304, 4
    %v2318 = vsel %vm533, %v2317, %v2280
    %v2319 = vrot.slane %v2280, 4
    %v2320 = vsel %vm533, %v2304, %v2319
    %v2321 = vrot.slane %v2308, 4
    %v2322 = vsel %vm533, %v2321, %v2284
    %v2323 = vrot.slane %v2284, 4
    %v2324 = vsel %vm533, %v2308, %v2323
    %v2325 = vld [vmem:[%s1] sm:$0xff]
    %v2326 = vld [vmem:[%s1 + $0x8] sm:$0xff]
    %v2327 = vld [vmem:[%s1 + $0x10] sm:$0xff]
    %v2328 = vld [vmem:[%s1 + $0x18] sm:$0xff]
    %v2329 = vld [vmem:[%s1 + $0x20] sm:$0xff]
    %v2330 = vld [vmem:[%s1 + $0x28] sm:$0xff]
    %v2331 = vld [vmem:[%s1 + $0x30] sm:$0xff]
    %v2332 = vld [vmem:[%s1 + $0x38] sm:$0xff]
    %v2333 = vld [vmem:[%s1 + $0x40] sm:$0xff]
    %v2334 = vld [vmem:[%s1 + $0x48] sm:$0xff]
    %v2335 = vld [vmem:[%s1 + $0x50] sm:$0xff]
    %v2336 = vld [vmem:[%s1 + $0x58] sm:$0xff]
    %v2337 = vld [vmem:[%s1 + $0x60] sm:$0xff]
    %v2338 = vld [vmem:[%s1 + $0x68] sm:$0xff]
    %v2339 = vld [vmem:[%s1 + $0x70] sm:$0xff]
    %v2340 = vld [vmem:[%s1 + $0x78] sm:$0xff]
    %v2357 = vrot.slane %v2325, 1
    %v2358 = vrot.slane %v2325, 2
    %v2359 = vrot.slane %v2325, 3
    %v2360 = vrot.slane %v2325, 4
    %v2361 = vrot.slane %v2325, 5
    %v2362 = vrot.slane %v2325, 6
    %v2363 = vrot.slane %v2325, 7
    %v2364 = vrot.slane %v2326, 1
    %v2365 = vrot.slane %v2326, 2
    %v2366 = vrot.slane %v2326, 3
    %v2367 = vrot.slane %v2326, 4
    %v2368 = vrot.slane %v2326, 5
    %v2369 = vrot.slane %v2326, 6
    %v2370 = vrot.slane %v2326, 7
    %v2371 = vrot.slane %v2327, 1
    %v2372 = vrot.slane %v2327, 2
    %v2373 = vrot.slane %v2327, 3
    %v2374 = vrot.slane %v2327, 4
    %v2375 = vrot.slane %v2327, 5
    %v2376 = vrot.slane %v2327, 6
    %v2377 = vrot.slane %v2327, 7
    %v2378 = vrot.slane %v2328, 1
    %v2379 = vrot.slane %v2328, 2
    %v2380 = vrot.slane %v2328, 3
    %v2381 = vrot.slane %v2328, 4
    %v2382 = vrot.slane %v2328, 5
    %v2383 = vrot.slane %v2328, 6
    %v2384 = vrot.slane %v2328, 7
    %v2385 = vrot.slane %v2329, 1
    %v2386 = vrot.slane %v2329, 2
    %v2387 = vrot.slane %v2329, 3
    %v2388 = vrot.slane %v2329, 4
    %v2389 = vrot.slane %v2329, 5
    %v2390 = vrot.slane %v2329, 6
    %v2391 = vrot.slane %v2329, 7
    %v2392 = vrot.slane %v2330, 1
    %v2393 = vrot.slane %v2330, 2
    %v2394 = vrot.slane %v2330, 3
    %v2395 = vrot.slane %v2330, 4
    %v2396 = vrot.slane %v2330, 5
    %v2397 = vrot.slane %v2330, 6
    %v2398 = vrot.slane %v2330, 7
    %v2399 = vrot.slane %v2331, 1
    %v2400 = vrot.slane %v2331, 2
    %v2401 = vrot.slane %v2331, 3
    %v2402 = vrot.slane %v2331, 4
    %v2403 = vrot.slane %v2331, 5
    %v2404 = vrot.slane %v2331, 6
    %v2405 = vrot.slane %v2331, 7
    %v2406 = vrot.slane %v2332, 1
    %v2407 = vrot.slane %v2332, 2
    %v2408 = vrot.slane %v2332, 3
    %v2409 = vrot.slane %v2332, 4
    %v2410 = vrot.slane %v2332, 5
    %v2411 = vrot.slane %v2332, 6
    %v2412 = vrot.slane %v2332, 7
    %v2413 = vrot.slane %v2333, 1
    %v2414 = vrot.slane %v2333, 2
    %v2415 = vrot.slane %v2333, 3
    %v2416 = vrot.slane %v2333, 4
    %v2417 = vrot.slane %v2333, 5
    %v2418 = vrot.slane %v2333, 6
    %v2419 = vrot.slane %v2333, 7
    %v2420 = vrot.slane %v2334, 1
    %v2421 = vrot.slane %v2334, 2
    %v2422 = vrot.slane %v2334, 3
    %v2423 = vrot.slane %v2334, 4
    %v2424 = vrot.slane %v2334, 5
    %v2425 = vrot.slane %v2334, 6
    %v2426 = vrot.slane %v2334, 7
    %v2427 = vrot.slane %v2335, 1
    %v2428 = vrot.slane %v2335, 2
    %v2429 = vrot.slane %v2335, 3
    %v2430 = vrot.slane %v2335, 4
    %v2431 = vrot.slane %v2335, 5
    %v2432 = vrot.slane %v2335, 6
    %v2433 = vrot.slane %v2335, 7
    %v2434 = vrot.slane %v2336, 1
    %v2435 = vrot.slane %v2336, 2
    %v2436 = vrot.slane %v2336, 3
    %v2437 = vrot.slane %v2336, 4
    %v2438 = vrot.slane %v2336, 5
    %v2439 = vrot.slane %v2336, 6
    %v2440 = vrot.slane %v2336, 7
    %v2441 = vrot.slane %v2337, 1
    %v2442 = vrot.slane %v2337, 2
    %v2443 = vrot.slane %v2337, 3
    %v2444 = vrot.slane %v2337, 4
    %v2445 = vrot.slane %v2337, 5
    %v2446 = vrot.slane %v2337, 6
    %v2447 = vrot.slane %v2337, 7
    %v2448 = vrot.slane %v2338, 1
    %v2449 = vrot.slane %v2338, 2
    %v2450 = vrot.slane %v2338, 3
    %v2451 = vrot.slane %v2338, 4
    %v2452 = vrot.slane %v2338, 5
    %v2453 = vrot.slane %v2338, 6
    %v2454 = vrot.slane %v2338, 7
    %v2455 = vrot.slane %v2339, 1
    %v2456 = vrot.slane %v2339, 2
    %v2457 = vrot.slane %v2339, 3
    %v2458 = vrot.slane %v2339, 4
    %v2459 = vrot.slane %v2339, 5
    %v2460 = vrot.slane %v2339, 6
    %v2461 = vrot.slane %v2339, 7
    %v2462 = vrot.slane %v2340, 1
    %v2463 = vrot.slane %v2340, 2
    %v2464 = vrot.slane %v2340, 3
    %v2465 = vrot.slane %v2340, 4
    %v2466 = vrot.slane %v2340, 5
    %v2467 = vrot.slane %v2340, 6
    %v2468 = vrot.slane %v2340, 7
    %v2469 = vperm.slane %v2325, 0
    %v2470 = vperm.slane %v2357, 0
    %v2471 = vperm.slane %v2358, 0
    %v2472 = vperm.slane %v2359, 0
    %v2473 = vperm.slane %v2360, 0
    %v2474 = vperm.slane %v2361, 0
    %v2475 = vperm.slane %v2362, 0
    %v2476 = vperm.slane %v2363, 0
    %v2477 = vperm.slane %v2326, 0
    %v2478 = vperm.slane %v2364, 0
    %v2479 = vperm.slane %v2365, 0
    %v2480 = vperm.slane %v2366, 0
    %v2481 = vperm.slane %v2367, 0
    %v2482 = vperm.slane %v2368, 0
    %v2483 = vperm.slane %v2369, 0
    %v2484 = vperm.slane %v2370, 0
    %v2485 = vperm.slane %v2327, 0
    %v2486 = vperm.slane %v2371, 0
    %v2487 = vperm.slane %v2372, 0
    %v2488 = vperm.slane %v2373, 0
    %v2489 = vperm.slane %v2374, 0
    %v2490 = vperm.slane %v2375, 0
    %v2491 = vperm.slane %v2376, 0
    %v2492 = vperm.slane %v2377, 0
    %v2493 = vperm.slane %v2328, 0
    %v2494 = vperm.slane %v2378, 0
    %v2495 = vperm.slane %v2379, 0
    %v2496 = vperm.slane %v2380, 0
    %v2497 = vperm.slane %v2381, 0
    %v2498 = vperm.slane %v2382, 0
    %v2499 = vperm.slane %v2383, 0
    %v2500 = vperm.slane %v2384, 0
    %v2501 = vperm.slane %v2329, 0
    %v2502 = vperm.slane %v2385, 0
    %v2503 = vperm.slane %v2386, 0
    %v2504 = vperm.slane %v2387, 0
    %v2505 = vperm.slane %v2388, 0
    %v2506 = vperm.slane %v2389, 0
    %v2507 = vperm.slane %v2390, 0
    %v2508 = vperm.slane %v2391, 0
    %v2509 = vperm.slane %v2330, 0
    %v2510 = vperm.slane %v2392, 0
    %v2511 = vperm.slane %v2393, 0
    %v2512 = vperm.slane %v2394, 0
    %v2513 = vperm.slane %v2395, 0
    %v2514 = vperm.slane %v2396, 0
    %v2515 = vperm.slane %v2397, 0
    %v2516 = vperm.slane %v2398, 0
    %v2517 = vperm.slane %v2331, 0
    %v2518 = vperm.slane %v2399, 0
    %v2519 = vperm.slane %v2400, 0
    %v2520 = vperm.slane %v2401, 0
    %v2521 = vperm.slane %v2402, 0
    %v2522 = vperm.slane %v2403, 0
    %v2523 = vperm.slane %v2404, 0
    %v2524 = vperm.slane %v2405, 0
    %v2525 = vperm.slane %v2332, 0
    %v2526 = vperm.slane %v2406, 0
    %v2527 = vperm.slane %v2407, 0
    %v2528 = vperm.slane %v2408, 0
    %v2529 = vperm.slane %v2409, 0
    %v2530 = vperm.slane %v2410, 0
    %v2531 = vperm.slane %v2411, 0
    %v2532 = vperm.slane %v2412, 0
    %v2533 = vperm.slane %v2333, 0
    %v2534 = vperm.slane %v2413, 0
    %v2535 = vperm.slane %v2414, 0
    %v2536 = vperm.slane %v2415, 0
    %v2537 = vperm.slane %v2416, 0
    %v2538 = vperm.slane %v2417, 0
    %v2539 = vperm.slane %v2418, 0
    %v2540 = vperm.slane %v2419, 0
    %v2541 = vperm.slane %v2334, 0
    %v2542 = vperm.slane %v2420, 0
    %v2543 = vperm.slane %v2421, 0
    %v2544 = vperm.slane %v2422, 0
    %v2545 = vperm.slane %v2423, 0
    %v2546 = vperm.slane %v2424, 0
    %v2547 = vperm.slane %v2425, 0
    %v2548 = vperm.slane %v2426, 0
    %v2549 = vperm.slane %v2335, 0
    %v2550 = vperm.slane %v2427, 0
    %v2551 = vperm.slane %v2428, 0
    %v2552 = vperm.slane %v2429, 0
    %v2553 = vperm.slane %v2430, 0
    %v2554 = vperm.slane %v2431, 0
    %v2555 = vperm.slane %v2432, 0
    %v2556 = vperm.slane %v2433, 0
    %v2557 = vperm.slane %v2336, 0
    %v2558 = vperm.slane %v2434, 0
    %v2559 = vperm.slane %v2435, 0
    %v2560 = vperm.slane %v2436, 0
    %v2561 = vperm.slane %v2437, 0
    %v2562 = vperm.slane %v2438, 0
    %v2563 = vperm.slane %v2439, 0
    %v2564 = vperm.slane %v2440, 0
    %v2565 = vperm.slane %v2337, 0
    %v2566 = vperm.slane %v2441, 0
    %v2567 = vperm.slane %v2442, 0
    %v2568 = vperm.slane %v2443, 0
    %v2569 = vperm.slane %v2444, 0
    %v2570 = vperm.slane %v2445, 0
    %v2571 = vperm.slane %v2446, 0
    %v2572 = vperm.slane %v2447, 0
    %v2573 = vperm.slane %v2338, 0
    %v2574 = vperm.slane %v2448, 0
    %v2575 = vperm.slane %v2449, 0
    %v2576 = vperm.slane %v2450, 0
    %v2577 = vperm.slane %v2451, 0
    %v2578 = vperm.slane %v2452, 0
    %v2579 = vperm.slane %v2453, 0
    %v2580 = vperm.slane %v2454, 0
    %v2581 = vperm.slane %v2339, 0
    %v2582 = vperm.slane %v2455, 0
    %v2583 = vperm.slane %v2456, 0
    %v2584 = vperm.slane %v2457, 0
    %v2585 = vperm.slane %v2458, 0
    %v2586 = vperm.slane %v2459, 0
    %v2587 = vperm.slane %v2460, 0
    %v2588 = vperm.slane %v2461, 0
    %v2589 = vperm.slane %v2340, 0
    %v2590 = vperm.slane %v2462, 0
    %v2591 = vperm.slane %v2463, 0
    %v2592 = vperm.slane %v2464, 0
    %v2593 = vperm.slane %v2465, 0
    %v2594 = vperm.slane %v2466, 0
    %v2595 = vperm.slane %v2467, 0
    %v2596 = vperm.slane %v2468, 0
    %v2725 = vadd.f32 %v630, %v2469
    %v2726 = vadd.f32 %v632, %v2470
    %v2727 = vadd.f32 %v634, %v2471
    %v2728 = vadd.f32 %v636, %v2472
    %v2729 = vadd.f32 %v638, %v2473
    %v2730 = vadd.f32 %v640, %v2474
    %v2731 = vadd.f32 %v642, %v2475
    %v2732 = vadd.f32 %v644, %v2476
    %v2733 = vadd.f32 %v742, %v2477
    %v2734 = vadd.f32 %v744, %v2478
    %v2735 = vadd.f32 %v746, %v2479
    %v2736 = vadd.f32 %v748, %v2480
    %v2737 = vadd.f32 %v750, %v2481
    %v2738 = vadd.f32 %v752, %v2482
    %v2739 = vadd.f32 %v754, %v2483
    %v2740 = vadd.f32 %v756, %v2484
    %v2741 = vadd.f32 %v854, %v2485
    %v2742 = vadd.f32 %v856, %v2486
    %v2743 = vadd.f32 %v858, %v2487
    %v2744 = vadd.f32 %v860, %v2488
    %v2745 = vadd.f32 %v862, %v2489
    %v2746 = vadd.f32 %v864, %v2490
    %v2747 = vadd.f32 %v866, %v2491
    %v2748 = vadd.f32 %v868, %v2492
    %v2749 = vadd.f32 %v966, %v2493
    %v2750 = vadd.f32 %v968, %v2494
    %v2751 = vadd.f32 %v970, %v2495
    %v2752 = vadd.f32 %v972, %v2496
    %v2753 = vadd.f32 %v974, %v2497
    %v2754 = vadd.f32 %v976, %v2498
    %v2755 = vadd.f32 %v978, %v2499
    %v2756 = vadd.f32 %v980, %v2500
    %v2757 = vadd.f32 %v1078, %v2501
    %v2758 = vadd.f32 %v1080, %v2502
    %v2759 = vadd.f32 %v1082, %v2503
    %v2760 = vadd.f32 %v1084, %v2504
    %v2761 = vadd.f32 %v1086, %v2505
    %v2762 = vadd.f32 %v1088, %v2506
    %v2763 = vadd.f32 %v1090, %v2507
    %v2764 = vadd.f32 %v1092, %v2508
    %v2765 = vadd.f32 %v1190, %v2509
    %v2766 = vadd.f32 %v1192, %v2510
    %v2767 = vadd.f32 %v1194, %v2511
    %v2768 = vadd.f32 %v1196, %v2512
    %v2769 = vadd.f32 %v1198, %v2513
    %v2770 = vadd.f32 %v1200, %v2514
    %v2771 = vadd.f32 %v1202, %v2515
    %v2772 = vadd.f32 %v1204, %v2516
    %v2773 = vadd.f32 %v1302, %v2517
    %v2774 = vadd.f32 %v1304, %v2518
    %v2775 = vadd.f32 %v1306, %v2519
    %v2776 = vadd.f32 %v1308, %v2520
    %v2777 = vadd.f32 %v1310, %v2521
    %v2778 = vadd.f32 %v1312, %v2522
    %v2779 = vadd.f32 %v1314, %v2523
    %v2780 = vadd.f32 %v1316, %v2524
    %v2781 = vadd.f32 %v1414, %v2525
    %v2782 = vadd.f32 %v1416, %v2526
    %v2783 = vadd.f32 %v1418, %v2527
    %v2784 = vadd.f32 %v1420, %v2528
    %v2785 = vadd.f32 %v1422, %v2529
    %v2786 = vadd.f32 %v1424, %v2530
    %v2787 = vadd.f32 %v1426, %v2531
    %v2788 = vadd.f32 %v1428, %v2532
    %v2789 = vadd.f32 %v1526, %v2533
    %v2790 = vadd.f32 %v1528, %v2534
    %v2791 = vadd.f32 %v1530, %v2535
    %v2792 = vadd.f32 %v1532, %v2536
    %v2793 = vadd.f32 %v1534, %v2537
    %v2794 = vadd.f32 %v1536, %v2538
    %v2795 = vadd.f32 %v1538, %v2539
    %v2796 = vadd.f32 %v1540, %v2540
    %v2797 = vadd.f32 %v1638, %v2541
    %v2798 = vadd.f32 %v1640, %v2542
    %v2799 = vadd.f32 %v1642, %v2543
    %v2800 = vadd.f32 %v1644, %v2544
    %v2801 = vadd.f32 %v1646, %v2545
    %v2802 = vadd.f32 %v1648, %v2546
    %v2803 = vadd.f32 %v1650, %v2547
    %v2804 = vadd.f32 %v1652, %v2548
    %v2805 = vadd.f32 %v1750, %v2549
    %v2806 = vadd.f32 %v1752, %v2550
    %v2807 = vadd.f32 %v1754, %v2551
    %v2808 = vadd.f32 %v1756, %v2552
    %v2809 = vadd.f32 %v1758, %v2553
    %v2810 = vadd.f32 %v1760, %v2554
    %v2811 = vadd.f32 %v1762, %v2555
    %v2812 = vadd.f32 %v1764, %v2556
    %v2813 = vadd.f32 %v1862, %v2557
    %v2814 = vadd.f32 %v1864, %v2558
    %v2815 = vadd.f32 %v1866, %v2559
    %v2816 = vadd.f32 %v1868, %v2560
    %v2817 = vadd.f32 %v1870, %v2561
    %v2818 = vadd.f32 %v1872, %v2562
    %v2819 = vadd.f32 %v1874, %v2563
    %v2820 = vadd.f32 %v1876, %v2564
    %v2821 = vadd.f32 %v1974, %v2565
    %v2822 = vadd.f32 %v1976, %v2566
    %v2823 = vadd.f32 %v1978, %v2567
    %v2824 = vadd.f32 %v1980, %v2568
    %v2825 = vadd.f32 %v1982, %v2569
    %v2826 = vadd.f32 %v1984, %v2570
    %v2827 = vadd.f32 %v1986, %v2571
    %v2828 = vadd.f32 %v1988, %v2572
    %v2829 = vadd.f32 %v2086, %v2573
    %v2830 = vadd.f32 %v2088, %v2574
    %v2831 = vadd.f32 %v2090, %v2575
    %v2832 = vadd.f32 %v2092, %v2576
    %v2833 = vadd.f32 %v2094, %v2577
    %v2834 = vadd.f32 %v2096, %v2578
    %v2835 = vadd.f32 %v2098, %v2579
    %v2836 = vadd.f32 %v2100, %v2580
    %v2837 = vadd.f32 %v2198, %v2581
    %v2838 = vadd.f32 %v2200, %v2582
    %v2839 = vadd.f32 %v2202, %v2583
    %v2840 = vadd.f32 %v2204, %v2584
    %v2841 = vadd.f32 %v2206, %v2585
    %v2842 = vadd.f32 %v2208, %v2586
    %v2843 = vadd.f32 %v2210, %v2587
    %v2844 = vadd.f32 %v2212, %v2588
    %v2845 = vadd.f32 %v2310, %v2589
    %v2846 = vadd.f32 %v2312, %v2590
    %v2847 = vadd.f32 %v2314, %v2591
    %v2848 = vadd.f32 %v2316, %v2592
    %v2849 = vadd.f32 %v2318, %v2593
    %v2850 = vadd.f32 %v2320, %v2594
    %v2851 = vadd.f32 %v2322, %v2595
    %v2852 = vadd.f32 %v2324, %v2596
    %v2853 = vtanh.pop %v2725
    %v2854 = vtanh.pop %v2726
    %v2855 = vtanh.pop %v2727
    %v2856 = vtanh.pop %v2728
    %v2857 = vtanh.pop %v2729
    %v2858 = vtanh.pop %v2730
    %v2859 = vtanh.pop %v2731
    %v2860 = vtanh.pop %v2732
    %v2861 = vtanh.pop %v2733
    %v2862 = vtanh.pop %v2734
    %v2863 = vtanh.pop %v2735
    %v2864 = vtanh.pop %v2736
    %v2865 = vtanh.pop %v2737
    %v2866 = vtanh.pop %v2738
    %v2867 = vtanh.pop %v2739
    %v2868 = vtanh.pop %v2740
    %v2869 = vtanh.pop %v2741
    %v2870 = vtanh.pop %v2742
    %v2871 = vtanh.pop %v2743
    %v2872 = vtanh.pop %v2744
    %v2873 = vtanh.pop %v2745
    %v2874 = vtanh.pop %v2746
    %v2875 = vtanh.pop %v2747
    %v2876 = vtanh.pop %v2748
    %v2877 = vtanh.pop %v2749
    %v2878 = vtanh.pop %v2750
    %v2879 = vtanh.pop %v2751
    %v2880 = vtanh.pop %v2752
    %v2881 = vtanh.pop %v2753
    %v2882 = vtanh.pop %v2754
    %v2883 = vtanh.pop %v2755
    %v2884 = vtanh.pop %v2756
    %v2885 = vtanh.pop %v2757
    %v2886 = vtanh.pop %v2758
    %v2887 = vtanh.pop %v2759
    %v2888 = vtanh.pop %v2760
    %v2889 = vtanh.pop %v2761
    %v2890 = vtanh.pop %v2762
    %v2891 = vtanh.pop %v2763
    %v2892 = vtanh.pop %v2764
    %v2893 = vtanh.pop %v2765
    %v2894 = vtanh.pop %v2766
    %v2895 = vtanh.pop %v2767
    %v2896 = vtanh.pop %v2768
    %v2897 = vtanh.pop %v2769
    %v2898 = vtanh.pop %v2770
    %v2899 = vtanh.pop %v2771
    %v2900 = vtanh.pop %v2772
    %v2901 = vtanh.pop %v2773
    %v2902 = vtanh.pop %v2774
    %v2903 = vtanh.pop %v2775
    %v2904 = vtanh.pop %v2776
    %v2905 = vtanh.pop %v2777
    %v2906 = vtanh.pop %v2778
    %v2907 = vtanh.pop %v2779
    %v2908 = vtanh.pop %v2780
    %v2909 = vtanh.pop %v2781
    %v2910 = vtanh.pop %v2782
    %v2911 = vtanh.pop %v2783
    %v2912 = vtanh.pop %v2784
    %v2913 = vtanh.pop %v2785
    %v2914 = vtanh.pop %v2786
    %v2915 = vtanh.pop %v2787
    %v2916 = vtanh.pop %v2788
    %v2917 = vtanh.pop %v2789
    %v2918 = vtanh.pop %v2790
    %v2919 = vtanh.pop %v2791
    %v2920 = vtanh.pop %v2792
    %v2921 = vtanh.pop %v2793
    %v2922 = vtanh.pop %v2794
    %v2923 = vtanh.pop %v2795
    %v2924 = vtanh.pop %v2796
    %v2925 = vtanh.pop %v2797
    %v2926 = vtanh.pop %v2798
    %v2927 = vtanh.pop %v2799
    %v2928 = vtanh.pop %v2800
    %v2929 = vtanh.pop %v2801
    %v2930 = vtanh.pop %v2802
    %v2931 = vtanh.pop %v2803
    %v2932 = vtanh.pop %v2804
    %v2933 = vtanh.pop %v2805
    %v2934 = vtanh.pop %v2806
    %v2935 = vtanh.pop %v2807
    %v2936 = vtanh.pop %v2808
    %v2937 = vtanh.pop %v2809
    %v2938 = vtanh.pop %v2810
    %v2939 = vtanh.pop %v2811
    %v2940 = vtanh.pop %v2812
    %v2941 = vtanh.pop %v2813
    %v2942 = vtanh.pop %v2814
    %v2943 = vtanh.pop %v2815
    %v2944 = vtanh.pop %v2816
    %v2945 = vtanh.pop %v2817
    %v2946 = vtanh.pop %v2818
    %v2947 = vtanh.pop %v2819
    %v2948 = vtanh.pop %v2820
    %v2949 = vtanh.pop %v2821
    %v2950 = vtanh.pop %v2822
    %v2951 = vtanh.pop %v2823
    %v2952 = vtanh.pop %v2824
    %v2953 = vtanh.pop %v2825
    %v2954 = vtanh.pop %v2826
    %v2955 = vtanh.pop %v2827
    %v2956 = vtanh.pop %v2828
    %v2957 = vtanh.pop %v2829
    %v2958 = vtanh.pop %v2830
    %v2959 = vtanh.pop %v2831
    %v2960 = vtanh.pop %v2832
    %v2961 = vtanh.pop %v2833
    %v2962 = vtanh.pop %v2834
    %v2963 = vtanh.pop %v2835
    %v2964 = vtanh.pop %v2836
    %v2965 = vtanh.pop %v2837
    %v2966 = vtanh.pop %v2838
    %v2967 = vtanh.pop %v2839
    %v2968 = vtanh.pop %v2840
    %v2969 = vtanh.pop %v2841
    %v2970 = vtanh.pop %v2842
    %v2971 = vtanh.pop %v2843
    %v2972 = vtanh.pop %v2844
    %v2973 = vtanh.pop %v2845
    %v2974 = vtanh.pop %v2846
    %v2975 = vtanh.pop %v2847
    %v2976 = vtanh.pop %v2848
    %v2977 = vtanh.pop %v2849
    %v2978 = vtanh.pop %v2850
    %v2979 = vtanh.pop %v2851
    %v2980 = vtanh.pop %v2852
    %v2981 = vld [vmem:[%s3] sm:$0x1]
    %v2983 = vperm.slane %v2981, 0
    %v2985 = vmul.f32 %v2853, %v2983
    %v2986 = vmul.f32 %v2854, %v2983
    %v2987 = vmul.f32 %v2855, %v2983
    %v2988 = vmul.f32 %v2856, %v2983
    %v2989 = vmul.f32 %v2857, %v2983
    %v2990 = vmul.f32 %v2858, %v2983
    %v2991 = vmul.f32 %v2859, %v2983
    %v2992 = vmul.f32 %v2860, %v2983
    %v2993 = vmul.f32 %v2861, %v2983
    %v2994 = vmul.f32 %v2862, %v2983
    %v2995 = vmul.f32 %v2863, %v2983
    %v2996 = vmul.f32 %v2864, %v2983
    %v2997 = vmul.f32 %v2865, %v2983
    %v2998 = vmul.f32 %v2866, %v2983
    %v2999 = vmul.f32 %v2867, %v2983
    %v3000 = vmul.f32 %v2868, %v2983
    %v3001 = vmul.f32 %v2869, %v2983
    %v3002 = vmul.f32 %v2870, %v2983
    %v3003 = vmul.f32 %v2871, %v2983
    %v3004 = vmul.f32 %v2872, %v2983
    %v3005 = vmul.f32 %v2873, %v2983
    %v3006 = vmul.f32 %v2874, %v2983
    %v3007 = vmul.f32 %v2875, %v2983
    %v3008 = vmul.f32 %v2876, %v2983
    %v3009 = vmul.f32 %v2877, %v2983
    %v3010 = vmul.f32 %v2878, %v2983
    %v3011 = vmul.f32 %v2879, %v2983
    %v3012 = vmul.f32 %v2880, %v2983
    %v3013 = vmul.f32 %v2881, %v2983
    %v3014 = vmul.f32 %v2882, %v2983
    %v3015 = vmul.f32 %v2883, %v2983
    %v3016 = vmul.f32 %v2884, %v2983
    %v3017 = vmul.f32 %v2885, %v2983
    %v3018 = vmul.f32 %v2886, %v2983
    %v3019 = vmul.f32 %v2887, %v2983
    %v3020 = vmul.f32 %v2888, %v2983
    %v3021 = vmul.f32 %v2889, %v2983
    %v3022 = vmul.f32 %v2890, %v2983
    %v3023 = vmul.f32 %v2891, %v2983
    %v3024 = vmul.f32 %v2892, %v2983
    %v3025 = vmul.f32 %v2893, %v2983
    %v3026 = vmul.f32 %v2894, %v2983
    %v3027 = vmul.f32 %v2895, %v2983
    %v3028 = vmul.f32 %v2896, %v2983
    %v3029 = vmul.f32 %v2897, %v2983
    %v3030 = vmul.f32 %v2898, %v2983
    %v3031 = vmul.f32 %v2899, %v2983
    %v3032 = vmul.f32 %v2900, %v2983
    %v3033 = vmul.f32 %v2901, %v2983
    %v3034 = vmul.f32 %v2902, %v2983
    %v3035 = vmul.f32 %v2903, %v2983
    %v3036 = vmul.f32 %v2904, %v2983
    %v3037 = vmul.f32 %v2905, %v2983
    %v3038 = vmul.f32 %v2906, %v2983
    %v3039 = vmul.f32 %v2907, %v2983
    %v3040 = vmul.f32 %v2908, %v2983
    %v3041 = vmul.f32 %v2909, %v2983
    %v3042 = vmul.f32 %v2910, %v2983
    %v3043 = vmul.f32 %v2911, %v2983
    %v3044 = vmul.f32 %v2912, %v2983
    %v3045 = vmul.f32 %v2913, %v2983
    %v3046 = vmul.f32 %v2914, %v2983
    %v3047 = vmul.f32 %v2915, %v2983
    %v3048 = vmul.f32 %v2916, %v2983
    %v3049 = vmul.f32 %v2917, %v2983
    %v3050 = vmul.f32 %v2918, %v2983
    %v3051 = vmul.f32 %v2919, %v2983
    %v3052 = vmul.f32 %v2920, %v2983
    %v3053 = vmul.f32 %v2921, %v2983
    %v3054 = vmul.f32 %v2922, %v2983
    %v3055 = vmul.f32 %v2923, %v2983
    %v3056 = vmul.f32 %v2924, %v2983
    %v3057 = vmul.f32 %v2925, %v2983
    %v3058 = vmul.f32 %v2926, %v2983
    %v3059 = vmul.f32 %v2927, %v2983
    %v3060 = vmul.f32 %v2928, %v2983
    %v3061 = vmul.f32 %v2929, %v2983
    %v3062 = vmul.f32 %v2930, %v2983
    %v3063 = vmul.f32 %v2931, %v2983
    %v3064 = vmul.f32 %v2932, %v2983
    %v3065 = vmul.f32 %v2933, %v2983
    %v3066 = vmul.f32 %v2934, %v2983
    %v3067 = vmul.f32 %v2935, %v2983
    %v3068 = vmul.f32 %v2936, %v2983
    %v3069 = vmul.f32 %v2937, %v2983
    %v3070 = vmul.f32 %v2938, %v2983
    %v3071 = vmul.f32 %v2939, %v2983
    %v3072 = vmul.f32 %v2940, %v2983
    %v3073 = vmul.f32 %v2941, %v2983
    %v3074 = vmul.f32 %v2942, %v2983
    %v3075 = vmul.f32 %v2943, %v2983
    %v3076 = vmul.f32 %v2944, %v2983
    %v3077 = vmul.f32 %v2945, %v2983
    %v3078 = vmul.f32 %v2946, %v2983
    %v3079 = vmul.f32 %v2947, %v2983
    %v3080 = vmul.f32 %v2948, %v2983
    %v3081 = vmul.f32 %v2949, %v2983
    %v3082 = vmul.f32 %v2950, %v2983
    %v3083 = vmul.f32 %v2951, %v2983
    %v3084 = vmul.f32 %v2952, %v2983
    %v3085 = vmul.f32 %v2953, %v2983
    %v3086 = vmul.f32 %v2954, %v2983
    %v3087 = vmul.f32 %v2955, %v2983
    %v3088 = vmul.f32 %v2956, %v2983
    %v3089 = vmul.f32 %v2957, %v2983
    %v3090 = vmul.f32 %v2958, %v2983
    %v3091 = vmul.f32 %v2959, %v2983
    %v3092 = vmul.f32 %v2960, %v2983
    %v3093 = vmul.f32 %v2961, %v2983
    %v3094 = vmul.f32 %v2962, %v2983
    %v3095 = vmul.f32 %v2963, %v2983
    %v3096 = vmul.f32 %v2964, %v2983
    %v3097 = vmul.f32 %v2965, %v2983
    %v3098 = vmul.f32 %v2966, %v2983
    %v3099 = vmul.f32 %v2967, %v2983
    %v3100 = vmul.f32 %v2968, %v2983
    %v3101 = vmul.f32 %v2969, %v2983
    %v3102 = vmul.f32 %v2970, %v2983
    %v3103 = vmul.f32 %v2971, %v2983
    %v3104 = vmul.f32 %v2972, %v2983
    %v3105 = vmul.f32 %v2973, %v2983
    %v3106 = vmul.f32 %v2974, %v2983
    %v3107 = vmul.f32 %v2975, %v2983
    %v3108 = vmul.f32 %v2976, %v2983
    %v3109 = vmul.f32 %v2977, %v2983
    %v3110 = vmul.f32 %v2978, %v2983
    %v3111 = vmul.f32 %v2979, %v2983
    %v3112 = vmul.f32 %v2980, %v2983
    %vm3113 = vcmask 261120
    %v3114 = vsel %vm3113, %v2985, 0.0
    %3115 = vadd.xlane.f32.xlu0 %v3114
    %v3116 = vpop.xlane.xlu0 %3115
    %v3117 = vsel %vm3113, %v2986, 0.0
    %3118 = vadd.xlane.f32.xlu0 %v3117
    %v3119 = vpop.xlane.xlu0 %3118
    %v3120 = vsel %vm3113, %v2987, 0.0
    %3121 = vadd.xlane.f32.xlu0 %v3120
    %v3122 = vpop.xlane.xlu0 %3121
    %v3123 = vsel %vm3113, %v2988, 0.0
    %3124 = vadd.xlane.f32.xlu0 %v3123
    %v3125 = vpop.xlane.xlu0 %3124
    %v3126 = vsel %vm3113, %v2989, 0.0
    %3127 = vadd.xlane.f32.xlu0 %v3126
    %v3128 = vpop.xlane.xlu0 %3127
    %v3129 = vsel %vm3113, %v2990, 0.0
    %3130 = vadd.xlane.f32.xlu0 %v3129
    %v3131 = vpop.xlane.xlu0 %3130
    %v3132 = vsel %vm3113, %v2991, 0.0
    %3133 = vadd.xlane.f32.xlu0 %v3132
    %v3134 = vpop.xlane.xlu0 %3133
    %v3135 = vsel %vm3113, %v2992, 0.0
    %3136 = vadd.xlane.f32.xlu0 %v3135
    %v3137 = vpop.xlane.xlu0 %3136
    %v3138 = vsel %vm3113, %v2993, 0.0
    %3139 = vadd.xlane.f32.xlu0 %v3138
    %v3140 = vpop.xlane.xlu0 %3139
    %v3141 = vsel %vm3113, %v2994, 0.0
    %3142 = vadd.xlane.f32.xlu0 %v3141
    %v3143 = vpop.xlane.xlu0 %3142
    %v3144 = vsel %vm3113, %v2995, 0.0
    %3145 = vadd.xlane.f32.xlu0 %v3144
    %v3146 = vpop.xlane.xlu0 %3145
    %v3147 = vsel %vm3113, %v2996, 0.0
    %3148 = vadd.xlane.f32.xlu0 %v3147
    %v3149 = vpop.xlane.xlu0 %3148
    %v3150 = vsel %vm3113, %v2997, 0.0
    %3151 = vadd.xlane.f32.xlu0 %v3150
    %v3152 = vpop.xlane.xlu0 %3151
    %v3153 = vsel %vm3113, %v2998, 0.0
    %3154 = vadd.xlane.f32.xlu0 %v3153
    %v3155 = vpop.xlane.xlu0 %3154
    %v3156 = vsel %vm3113, %v2999, 0.0
    %3157 = vadd.xlane.f32.xlu0 %v3156
    %v3158 = vpop.xlane.xlu0 %3157
    %v3159 = vsel %vm3113, %v3000, 0.0
    %3160 = vadd.xlane.f32.xlu0 %v3159
    %v3161 = vpop.xlane.xlu0 %3160
    %v3162 = vsel %vm3113, %v3001, 0.0
    %3163 = vadd.xlane.f32.xlu0 %v3162
    %v3164 = vpop.xlane.xlu0 %3163
    %v3165 = vsel %vm3113, %v3002, 0.0
    %3166 = vadd.xlane.f32.xlu0 %v3165
    %v3167 = vpop.xlane.xlu0 %3166
    %v3168 = vsel %vm3113, %v3003, 0.0
    %3169 = vadd.xlane.f32.xlu0 %v3168
    %v3170 = vpop.xlane.xlu0 %3169
    %v3171 = vsel %vm3113, %v3004, 0.0
    %3172 = vadd.xlane.f32.xlu0 %v3171
    %v3173 = vpop.xlane.xlu0 %3172
    %v3174 = vsel %vm3113, %v3005, 0.0
    %3175 = vadd.xlane.f32.xlu0 %v3174
    %v3176 = vpop.xlane.xlu0 %3175
    %v3177 = vsel %vm3113, %v3006, 0.0
    %3178 = vadd.xlane.f32.xlu0 %v3177
    %v3179 = vpop.xlane.xlu0 %3178
    %v3180 = vsel %vm3113, %v3007, 0.0
    %3181 = vadd.xlane.f32.xlu0 %v3180
    %v3182 = vpop.xlane.xlu0 %3181
    %v3183 = vsel %vm3113, %v3008, 0.0
    %3184 = vadd.xlane.f32.xlu0 %v3183
    %v3185 = vpop.xlane.xlu0 %3184
    %v3186 = vsel %vm3113, %v3009, 0.0
    %3187 = vadd.xlane.f32.xlu0 %v3186
    %v3188 = vpop.xlane.xlu0 %3187
    %v3189 = vsel %vm3113, %v3010, 0.0
    %3190 = vadd.xlane.f32.xlu0 %v3189
    %v3191 = vpop.xlane.xlu0 %3190
    %v3192 = vsel %vm3113, %v3011, 0.0
    %3193 = vadd.xlane.f32.xlu0 %v3192
    %v3194 = vpop.xlane.xlu0 %3193
    %v3195 = vsel %vm3113, %v3012, 0.0
    %3196 = vadd.xlane.f32.xlu0 %v3195
    %v3197 = vpop.xlane.xlu0 %3196
    %v3198 = vsel %vm3113, %v3013, 0.0
    %3199 = vadd.xlane.f32.xlu0 %v3198
    %v3200 = vpop.xlane.xlu0 %3199
    %v3201 = vsel %vm3113, %v3014, 0.0
    %3202 = vadd.xlane.f32.xlu0 %v3201
    %v3203 = vpop.xlane.xlu0 %3202
    %v3204 = vsel %vm3113, %v3015, 0.0
    %3205 = vadd.xlane.f32.xlu0 %v3204
    %v3206 = vpop.xlane.xlu0 %3205
    %v3207 = vsel %vm3113, %v3016, 0.0
    %3208 = vadd.xlane.f32.xlu0 %v3207
    %v3209 = vpop.xlane.xlu0 %3208
    %v3210 = vsel %vm3113, %v3017, 0.0
    %3211 = vadd.xlane.f32.xlu0 %v3210
    %v3212 = vpop.xlane.xlu0 %3211
    %v3213 = vsel %vm3113, %v3018, 0.0
    %3214 = vadd.xlane.f32.xlu0 %v3213
    %v3215 = vpop.xlane.xlu0 %3214
    %v3216 = vsel %vm3113, %v3019, 0.0
    %3217 = vadd.xlane.f32.xlu0 %v3216
    %v3218 = vpop.xlane.xlu0 %3217
    %v3219 = vsel %vm3113, %v3020, 0.0
    %3220 = vadd.xlane.f32.xlu0 %v3219
    %v3221 = vpop.xlane.xlu0 %3220
    %v3222 = vsel %vm3113, %v3021, 0.0
    %3223 = vadd.xlane.f32.xlu0 %v3222
    %v3224 = vpop.xlane.xlu0 %3223
    %v3225 = vsel %vm3113, %v3022, 0.0
    %3226 = vadd.xlane.f32.xlu0 %v3225
    %v3227 = vpop.xlane.xlu0 %3226
    %v3228 = vsel %vm3113, %v3023, 0.0
    %3229 = vadd.xlane.f32.xlu0 %v3228
    %v3230 = vpop.xlane.xlu0 %3229
    %v3231 = vsel %vm3113, %v3024, 0.0
    %3232 = vadd.xlane.f32.xlu0 %v3231
    %v3233 = vpop.xlane.xlu0 %3232
    %v3234 = vsel %vm3113, %v3025, 0.0
    %3235 = vadd.xlane.f32.xlu0 %v3234
    %v3236 = vpop.xlane.xlu0 %3235
    %v3237 = vsel %vm3113, %v3026, 0.0
    %3238 = vadd.xlane.f32.xlu0 %v3237
    %v3239 = vpop.xlane.xlu0 %3238
    %v3240 = vsel %vm3113, %v3027, 0.0
    %3241 = vadd.xlane.f32.xlu0 %v3240
    %v3242 = vpop.xlane.xlu0 %3241
    %v3243 = vsel %vm3113, %v3028, 0.0
    %3244 = vadd.xlane.f32.xlu0 %v3243
    %v3245 = vpop.xlane.xlu0 %3244
    %v3246 = vsel %vm3113, %v3029, 0.0
    %3247 = vadd.xlane.f32.xlu0 %v3246
    %v3248 = vpop.xlane.xlu0 %3247
    %v3249 = vsel %vm3113, %v3030, 0.0
    %3250 = vadd.xlane.f32.xlu0 %v3249
    %v3251 = vpop.xlane.xlu0 %3250
    %v3252 = vsel %vm3113, %v3031, 0.0
    %3253 = vadd.xlane.f32.xlu0 %v3252
    %v3254 = vpop.xlane.xlu0 %3253
    %v3255 = vsel %vm3113, %v3032, 0.0
    %3256 = vadd.xlane.f32.xlu0 %v3255
    %v3257 = vpop.xlane.xlu0 %3256
    %v3258 = vsel %vm3113, %v3033, 0.0
    %3259 = vadd.xlane.f32.xlu0 %v3258
    %v3260 = vpop.xlane.xlu0 %3259
    %v3261 = vsel %vm3113, %v3034, 0.0
    %3262 = vadd.xlane.f32.xlu0 %v3261
    %v3263 = vpop.xlane.xlu0 %3262
    %v3264 = vsel %vm3113, %v3035, 0.0
    %3265 = vadd.xlane.f32.xlu0 %v3264
    %v3266 = vpop.xlane.xlu0 %3265
    %v3267 = vsel %vm3113, %v3036, 0.0
    %3268 = vadd.xlane.f32.xlu0 %v3267
    %v3269 = vpop.xlane.xlu0 %3268
    %v3270 = vsel %vm3113, %v3037, 0.0
    %3271 = vadd.xlane.f32.xlu0 %v3270
    %v3272 = vpop.xlane.xlu0 %3271
    %v3273 = vsel %vm3113, %v3038, 0.0
    %3274 = vadd.xlane.f32.xlu0 %v3273
    %v3275 = vpop.xlane.xlu0 %3274
    %v3276 = vsel %vm3113, %v3039, 0.0
    %3277 = vadd.xlane.f32.xlu0 %v3276
    %v3278 = vpop.xlane.xlu0 %3277
    %v3279 = vsel %vm3113, %v3040, 0.0
    %3280 = vadd.xlane.f32.xlu0 %v3279
    %v3281 = vpop.xlane.xlu0 %3280
    %v3282 = vsel %vm3113, %v3041, 0.0
    %3283 = vadd.xlane.f32.xlu0 %v3282
    %v3284 = vpop.xlane.xlu0 %3283
    %v3285 = vsel %vm3113, %v3042, 0.0
    %3286 = vadd.xlane.f32.xlu0 %v3285
    %v3287 = vpop.xlane.xlu0 %3286
    %v3288 = vsel %vm3113, %v3043, 0.0
    %3289 = vadd.xlane.f32.xlu0 %v3288
    %v3290 = vpop.xlane.xlu0 %3289
    %v3291 = vsel %vm3113, %v3044, 0.0
    %3292 = vadd.xlane.f32.xlu0 %v3291
    %v3293 = vpop.xlane.xlu0 %3292
    %v3294 = vsel %vm3113, %v3045, 0.0
    %3295 = vadd.xlane.f32.xlu0 %v3294
    %v3296 = vpop.xlane.xlu0 %3295
    %v3297 = vsel %vm3113, %v3046, 0.0
    %3298 = vadd.xlane.f32.xlu0 %v3297
    %v3299 = vpop.xlane.xlu0 %3298
    %v3300 = vsel %vm3113, %v3047, 0.0
    %3301 = vadd.xlane.f32.xlu0 %v3300
    %v3302 = vpop.xlane.xlu0 %3301
    %v3303 = vsel %vm3113, %v3048, 0.0
    %3304 = vadd.xlane.f32.xlu0 %v3303
    %v3305 = vpop.xlane.xlu0 %3304
    %v3306 = vsel %vm3113, %v3049, 0.0
    %3307 = vadd.xlane.f32.xlu0 %v3306
    %v3308 = vpop.xlane.xlu0 %3307
    %v3309 = vsel %vm3113, %v3050, 0.0
    %3310 = vadd.xlane.f32.xlu0 %v3309
    %v3311 = vpop.xlane.xlu0 %3310
    %v3312 = vsel %vm3113, %v3051, 0.0
    %3313 = vadd.xlane.f32.xlu0 %v3312
    %v3314 = vpop.xlane.xlu0 %3313
    %v3315 = vsel %vm3113, %v3052, 0.0
    %3316 = vadd.xlane.f32.xlu0 %v3315
    %v3317 = vpop.xlane.xlu0 %3316
    %v3318 = vsel %vm3113, %v3053, 0.0
    %3319 = vadd.xlane.f32.xlu0 %v3318
    %v3320 = vpop.xlane.xlu0 %3319
    %v3321 = vsel %vm3113, %v3054, 0.0
    %3322 = vadd.xlane.f32.xlu0 %v3321
    %v3323 = vpop.xlane.xlu0 %3322
    %v3324 = vsel %vm3113, %v3055, 0.0
    %3325 = vadd.xlane.f32.xlu0 %v3324
    %v3326 = vpop.xlane.xlu0 %3325
    %v3327 = vsel %vm3113, %v3056, 0.0
    %3328 = vadd.xlane.f32.xlu0 %v3327
    %v3329 = vpop.xlane.xlu0 %3328
    %v3330 = vsel %vm3113, %v3057, 0.0
    %3331 = vadd.xlane.f32.xlu0 %v3330
    %v3332 = vpop.xlane.xlu0 %3331
    %v3333 = vsel %vm3113, %v3058, 0.0
    %3334 = vadd.xlane.f32.xlu0 %v3333
    %v3335 = vpop.xlane.xlu0 %3334
    %v3336 = vsel %vm3113, %v3059, 0.0
    %3337 = vadd.xlane.f32.xlu0 %v3336
    %v3338 = vpop.xlane.xlu0 %3337
    %v3339 = vsel %vm3113, %v3060, 0.0
    %3340 = vadd.xlane.f32.xlu0 %v3339
    %v3341 = vpop.xlane.xlu0 %3340
    %v3342 = vsel %vm3113, %v3061, 0.0
    %3343 = vadd.xlane.f32.xlu0 %v3342
    %v3344 = vpop.xlane.xlu0 %3343
    %v3345 = vsel %vm3113, %v3062, 0.0
    %3346 = vadd.xlane.f32.xlu0 %v3345
    %v3347 = vpop.xlane.xlu0 %3346
    %v3348 = vsel %vm3113, %v3063, 0.0
    %3349 = vadd.xlane.f32.xlu0 %v3348
    %v3350 = vpop.xlane.xlu0 %3349
    %v3351 = vsel %vm3113, %v3064, 0.0
    %3352 = vadd.xlane.f32.xlu0 %v3351
    %v3353 = vpop.xlane.xlu0 %3352
    %v3354 = vsel %vm3113, %v3065, 0.0
    %3355 = vadd.xlane.f32.xlu0 %v3354
    %v3356 = vpop.xlane.xlu0 %3355
    %v3357 = vsel %vm3113, %v3066, 0.0
    %3358 = vadd.xlane.f32.xlu0 %v3357
    %v3359 = vpop.xlane.xlu0 %3358
    %v3360 = vsel %vm3113, %v3067, 0.0
    %3361 = vadd.xlane.f32.xlu0 %v3360
    %v3362 = vpop.xlane.xlu0 %3361
    %v3363 = vsel %vm3113, %v3068, 0.0
    %3364 = vadd.xlane.f32.xlu0 %v3363
    %v3365 = vpop.xlane.xlu0 %3364
    %v3366 = vsel %vm3113, %v3069, 0.0
    %3367 = vadd.xlane.f32.xlu0 %v3366
    %v3368 = vpop.xlane.xlu0 %3367
    %v3369 = vsel %vm3113, %v3070, 0.0
    %3370 = vadd.xlane.f32.xlu0 %v3369
    %v3371 = vpop.xlane.xlu0 %3370
    %v3372 = vsel %vm3113, %v3071, 0.0
    %3373 = vadd.xlane.f32.xlu0 %v3372
    %v3374 = vpop.xlane.xlu0 %3373
    %v3375 = vsel %vm3113, %v3072, 0.0
    %3376 = vadd.xlane.f32.xlu0 %v3375
    %v3377 = vpop.xlane.xlu0 %3376
    %v3378 = vsel %vm3113, %v3073, 0.0
    %3379 = vadd.xlane.f32.xlu0 %v3378
    %v3380 = vpop.xlane.xlu0 %3379
    %v3381 = vsel %vm3113, %v3074, 0.0
    %3382 = vadd.xlane.f32.xlu0 %v3381
    %v3383 = vpop.xlane.xlu0 %3382
    %v3384 = vsel %vm3113, %v3075, 0.0
    %3385 = vadd.xlane.f32.xlu0 %v3384
    %v3386 = vpop.xlane.xlu0 %3385
    %v3387 = vsel %vm3113, %v3076, 0.0
    %3388 = vadd.xlane.f32.xlu0 %v3387
    %v3389 = vpop.xlane.xlu0 %3388
    %v3390 = vsel %vm3113, %v3077, 0.0
    %3391 = vadd.xlane.f32.xlu0 %v3390
    %v3392 = vpop.xlane.xlu0 %3391
    %v3393 = vsel %vm3113, %v3078, 0.0
    %3394 = vadd.xlane.f32.xlu0 %v3393
    %v3395 = vpop.xlane.xlu0 %3394
    %v3396 = vsel %vm3113, %v3079, 0.0
    %3397 = vadd.xlane.f32.xlu0 %v3396
    %v3398 = vpop.xlane.xlu0 %3397
    %v3399 = vsel %vm3113, %v3080, 0.0
    %3400 = vadd.xlane.f32.xlu0 %v3399
    %v3401 = vpop.xlane.xlu0 %3400
    %v3402 = vsel %vm3113, %v3081, 0.0
    %3403 = vadd.xlane.f32.xlu0 %v3402
    %v3404 = vpop.xlane.xlu0 %3403
    %v3405 = vsel %vm3113, %v3082, 0.0
    %3406 = vadd.xlane.f32.xlu0 %v3405
    %v3407 = vpop.xlane.xlu0 %3406
    %v3408 = vsel %vm3113, %v3083, 0.0
    %3409 = vadd.xlane.f32.xlu0 %v3408
    %v3410 = vpop.xlane.xlu0 %3409
    %v3411 = vsel %vm3113, %v3084, 0.0
    %3412 = vadd.xlane.f32.xlu0 %v3411
    %v3413 = vpop.xlane.xlu0 %3412
    %v3414 = vsel %vm3113, %v3085, 0.0
    %3415 = vadd.xlane.f32.xlu0 %v3414
    %v3416 = vpop.xlane.xlu0 %3415
    %v3417 = vsel %vm3113, %v3086, 0.0
    %3418 = vadd.xlane.f32.xlu0 %v3417
    %v3419 = vpop.xlane.xlu0 %3418
    %v3420 = vsel %vm3113, %v3087, 0.0
    %3421 = vadd.xlane.f32.xlu0 %v3420
    %v3422 = vpop.xlane.xlu0 %3421
    %v3423 = vsel %vm3113, %v3088, 0.0
    %3424 = vadd.xlane.f32.xlu0 %v3423
    %v3425 = vpop.xlane.xlu0 %3424
    %v3426 = vsel %vm3113, %v3089, 0.0
    %3427 = vadd.xlane.f32.xlu0 %v3426
    %v3428 = vpop.xlane.xlu0 %3427
    %v3429 = vsel %vm3113, %v3090, 0.0
    %3430 = vadd.xlane.f32.xlu0 %v3429
    %v3431 = vpop.xlane.xlu0 %3430
    %v3432 = vsel %vm3113, %v3091, 0.0
    %3433 = vadd.xlane.f32.xlu0 %v3432
    %v3434 = vpop.xlane.xlu0 %3433
    %v3435 = vsel %vm3113, %v3092, 0.0
    %3436 = vadd.xlane.f32.xlu0 %v3435
    %v3437 = vpop.xlane.xlu0 %3436
    %v3438 = vsel %vm3113, %v3093, 0.0
    %3439 = vadd.xlane.f32.xlu0 %v3438
    %v3440 = vpop.xlane.xlu0 %3439
    %v3441 = vsel %vm3113, %v3094, 0.0
    %3442 = vadd.xlane.f32.xlu0 %v3441
    %v3443 = vpop.xlane.xlu0 %3442
    %v3444 = vsel %vm3113, %v3095, 0.0
    %3445 = vadd.xlane.f32.xlu0 %v3444
    %v3446 = vpop.xlane.xlu0 %3445
    %v3447 = vsel %vm3113, %v3096, 0.0
    %3448 = vadd.xlane.f32.xlu0 %v3447
    %v3449 = vpop.xlane.xlu0 %3448
    %v3450 = vsel %vm3113, %v3097, 0.0
    %3451 = vadd.xlane.f32.xlu0 %v3450
    %v3452 = vpop.xlane.xlu0 %3451
    %v3453 = vsel %vm3113, %v3098, 0.0
    %3454 = vadd.xlane.f32.xlu0 %v3453
    %v3455 = vpop.xlane.xlu0 %3454
    %v3456 = vsel %vm3113, %v3099, 0.0
    %3457 = vadd.xlane.f32.xlu0 %v3456
    %v3458 = vpop.xlane.xlu0 %3457
    %v3459 = vsel %vm3113, %v3100, 0.0
    %3460 = vadd.xlane.f32.xlu0 %v3459
    %v3461 = vpop.xlane.xlu0 %3460
    %v3462 = vsel %vm3113, %v3101, 0.0
    %3463 = vadd.xlane.f32.xlu0 %v3462
    %v3464 = vpop.xlane.xlu0 %3463
    %v3465 = vsel %vm3113, %v3102, 0.0
    %3466 = vadd.xlane.f32.xlu0 %v3465
    %v3467 = vpop.xlane.xlu0 %3466
    %v3468 = vsel %vm3113, %v3103, 0.0
    %3469 = vadd.xlane.f32.xlu0 %v3468
    %v3470 = vpop.xlane.xlu0 %3469
    %v3471 = vsel %vm3113, %v3104, 0.0
    %3472 = vadd.xlane.f32.xlu0 %v3471
    %v3473 = vpop.xlane.xlu0 %3472
    %v3474 = vsel %vm3113, %v3105, 0.0
    %3475 = vadd.xlane.f32.xlu0 %v3474
    %v3476 = vpop.xlane.xlu0 %3475
    %v3477 = vsel %vm3113, %v3106, 0.0
    %3478 = vadd.xlane.f32.xlu0 %v3477
    %v3479 = vpop.xlane.xlu0 %3478
    %v3480 = vsel %vm3113, %v3107, 0.0
    %3481 = vadd.xlane.f32.xlu0 %v3480
    %v3482 = vpop.xlane.xlu0 %3481
    %v3483 = vsel %vm3113, %v3108, 0.0
    %3484 = vadd.xlane.f32.xlu0 %v3483
    %v3485 = vpop.xlane.xlu0 %3484
    %v3486 = vsel %vm3113, %v3109, 0.0
    %3487 = vadd.xlane.f32.xlu0 %v3486
    %v3488 = vpop.xlane.xlu0 %3487
    %v3489 = vsel %vm3113, %v3110, 0.0
    %3490 = vadd.xlane.f32.xlu0 %v3489
    %v3491 = vpop.xlane.xlu0 %3490
    %v3492 = vsel %vm3113, %v3111, 0.0
    %3493 = vadd.xlane.f32.xlu0 %v3492
    %v3494 = vpop.xlane.xlu0 %3493
    %v3495 = vsel %vm3113, %v3112, 0.0
    %3496 = vadd.xlane.f32.xlu0 %v3495
    %v3497 = vpop.xlane.xlu0 %3496
    %v3626 = vlaneseq
    %v3627 = vand.u32 %v3626, 127
    %v3628 = vperm.slane %v3116, %v3627
    %v3629 = vperm.slane %v3119, %v3627
    %v3630 = vperm.slane %v3122, %v3627
    %v3631 = vperm.slane %v3125, %v3627
    %v3632 = vperm.slane %v3128, %v3627
    %v3633 = vperm.slane %v3131, %v3627
    %v3634 = vperm.slane %v3134, %v3627
    %v3635 = vperm.slane %v3137, %v3627
    %v3636 = vperm.slane %v3140, %v3627
    %v3637 = vperm.slane %v3143, %v3627
    %v3638 = vperm.slane %v3146, %v3627
    %v3639 = vperm.slane %v3149, %v3627
    %v3640 = vperm.slane %v3152, %v3627
    %v3641 = vperm.slane %v3155, %v3627
    %v3642 = vperm.slane %v3158, %v3627
    %v3643 = vperm.slane %v3161, %v3627
    %v3644 = vperm.slane %v3164, %v3627
    %v3645 = vperm.slane %v3167, %v3627
    %v3646 = vperm.slane %v3170, %v3627
    %v3647 = vperm.slane %v3173, %v3627
    %v3648 = vperm.slane %v3176, %v3627
    %v3649 = vperm.slane %v3179, %v3627
    %v3650 = vperm.slane %v3182, %v3627
    %v3651 = vperm.slane %v3185, %v3627
    %v3652 = vperm.slane %v3188, %v3627
    %v3653 = vperm.slane %v3191, %v3627
    %v3654 = vperm.slane %v3194, %v3627
    %v3655 = vperm.slane %v3197, %v3627
    %v3656 = vperm.slane %v3200, %v3627
    %v3657 = vperm.slane %v3203, %v3627
    %v3658 = vperm.slane %v3206, %v3627
    %v3659 = vperm.slane %v3209, %v3627
    %v3660 = vperm.slane %v3212, %v3627
    %v3661 = vperm.slane %v3215, %v3627
    %v3662 = vperm.slane %v3218, %v3627
    %v3663 = vperm.slane %v3221, %v3627
    %v3664 = vperm.slane %v3224, %v3627
    %v3665 = vperm.slane %v3227, %v3627
    %v3666 = vperm.slane %v3230, %v3627
    %v3667 = vperm.slane %v3233, %v3627
    %v3668 = vperm.slane %v3236, %v3627
    %v3669 = vperm.slane %v3239, %v3627
    %v3670 = vperm.slane %v3242, %v3627
    %v3671 = vperm.slane %v3245, %v3627
    %v3672 = vperm.slane %v3248, %v3627
    %v3673 = vperm.slane %v3251, %v3627
    %v3674 = vperm.slane %v3254, %v3627
    %v3675 = vperm.slane %v3257, %v3627
    %v3676 = vperm.slane %v3260, %v3627
    %v3677 = vperm.slane %v3263, %v3627
    %v3678 = vperm.slane %v3266, %v3627
    %v3679 = vperm.slane %v3269, %v3627
    %v3680 = vperm.slane %v3272, %v3627
    %v3681 = vperm.slane %v3275, %v3627
    %v3682 = vperm.slane %v3278, %v3627
    %v3683 = vperm.slane %v3281, %v3627
    %v3684 = vperm.slane %v3284, %v3627
    %v3685 = vperm.slane %v3287, %v3627
    %v3686 = vperm.slane %v3290, %v3627
    %v3687 = vperm.slane %v3293, %v3627
    %v3688 = vperm.slane %v3296, %v3627
    %v3689 = vperm.slane %v3299, %v3627
    %v3690 = vperm.slane %v3302, %v3627
    %v3691 = vperm.slane %v3305, %v3627
    %v3692 = vperm.slane %v3308, %v3627
    %v3693 = vperm.slane %v3311, %v3627
    %v3694 = vperm.slane %v3314, %v3627
    %v3695 = vperm.slane %v3317, %v3627
    %v3696 = vperm.slane %v3320, %v3627
    %v3697 = vperm.slane %v3323, %v3627
    %v3698 = vperm.slane %v3326, %v3627
    %v3699 = vperm.slane %v3329, %v3627
    %v3700 = vperm.slane %v3332, %v3627
    %v3701 = vperm.slane %v3335, %v3627
    %v3702 = vperm.slane %v3338, %v3627
    %v3703 = vperm.slane %v3341, %v3627
    %v3704 = vperm.slane %v3344, %v3627
    %v3705 = vperm.slane %v3347, %v3627
    %v3706 = vperm.slane %v3350, %v3627
    %v3707 = vperm.slane %v3353, %v3627
    %v3708 = vperm.slane %v3356, %v3627
    %v3709 = vperm.slane %v3359, %v3627
    %v3710 = vperm.slane %v3362, %v3627
    %v3711 = vperm.slane %v3365, %v3627
    %v3712 = vperm.slane %v3368, %v3627
    %v3713 = vperm.slane %v3371, %v3627
    %v3714 = vperm.slane %v3374, %v3627
    %v3715 = vperm.slane %v3377, %v3627
    %v3716 = vperm.slane %v3380, %v3627
    %v3717 = vperm.slane %v3383, %v3627
    %v3718 = vperm.slane %v3386, %v3627
    %v3719 = vperm.slane %v3389, %v3627
    %v3720 = vperm.slane %v3392, %v3627
    %v3721 = vperm.slane %v3395, %v3627
    %v3722 = vperm.slane %v3398, %v3627
    %v3723 = vperm.slane %v3401, %v3627
    %v3724 = vperm.slane %v3404, %v3627
    %v3725 = vperm.slane %v3407, %v3627
    %v3726 = vperm.slane %v3410, %v3627
    %v3727 = vperm.slane %v3413, %v3627
    %v3728 = vperm.slane %v3416, %v3627
    %v3729 = vperm.slane %v3419, %v3627
    %v3730 = vperm.slane %v3422, %v3627
    %v3731 = vperm.slane %v3425, %v3627
    %v3732 = vperm.slane %v3428, %v3627
    %v3733 = vperm.slane %v3431, %v3627
    %v3734 = vperm.slane %v3434, %v3627
    %v3735 = vperm.slane %v3437, %v3627
    %v3736 = vperm.slane %v3440, %v3627
    %v3737 = vperm.slane %v3443, %v3627
    %v3738 = vperm.slane %v3446, %v3627
    %v3739 = vperm.slane %v3449, %v3627
    %v3740 = vperm.slane %v3452, %v3627
    %v3741 = vperm.slane %v3455, %v3627
    %v3742 = vperm.slane %v3458, %v3627
    %v3743 = vperm.slane %v3461, %v3627
    %v3744 = vperm.slane %v3464, %v3627
    %v3745 = vperm.slane %v3467, %v3627
    %v3746 = vperm.slane %v3470, %v3627
    %v3747 = vperm.slane %v3473, %v3627
    %v3748 = vperm.slane %v3476, %v3627
    %v3749 = vperm.slane %v3479, %v3627
    %v3750 = vperm.slane %v3482, %v3627
    %v3751 = vperm.slane %v3485, %v3627
    %v3752 = vperm.slane %v3488, %v3627
    %v3753 = vperm.slane %v3491, %v3627
    %v3754 = vperm.slane %v3494, %v3627
    %v3755 = vperm.slane %v3497, %v3627
    %vm3756 = vcmask 1041409
    %v3757 = vsel %vm3756, %v3629, %v3628
    %vm3758 = vcmask 1042434
    %v3759 = vsel %vm3758, %v3630, %v3757
    %vm3760 = vcmask 1043459
    %v3761 = vsel %vm3760, %v3631, %v3759
    %vm3762 = vcmask 1044484
    %v3763 = vsel %vm3762, %v3632, %v3761
    %vm3764 = vcmask 1045509
    %v3765 = vsel %vm3764, %v3633, %v3763
    %vm3766 = vcmask 1046534
    %v3767 = vsel %vm3766, %v3634, %v3765
    %vm3768 = vcmask 1047559
    %v3769 = vsel %vm3768, %v3635, %v3767
    %v3770 = vsel %vm3756, %v3637, %v3636
    %v3771 = vsel %vm3758, %v3638, %v3770
    %v3772 = vsel %vm3760, %v3639, %v3771
    %v3773 = vsel %vm3762, %v3640, %v3772
    %v3774 = vsel %vm3764, %v3641, %v3773
    %v3775 = vsel %vm3766, %v3642, %v3774
    %v3776 = vsel %vm3768, %v3643, %v3775
    %v3777 = vsel %vm3756, %v3645, %v3644
    %v3778 = vsel %vm3758, %v3646, %v3777
    %v3779 = vsel %vm3760, %v3647, %v3778
    %v3780 = vsel %vm3762, %v3648, %v3779
    %v3781 = vsel %vm3764, %v3649, %v3780
    %v3782 = vsel %vm3766, %v3650, %v3781
    %v3783 = vsel %vm3768, %v3651, %v3782
    %v3784 = vsel %vm3756, %v3653, %v3652
    %v3785 = vsel %vm3758, %v3654, %v3784
    %v3786 = vsel %vm3760, %v3655, %v3785
    %v3787 = vsel %vm3762, %v3656, %v3786
    %v3788 = vsel %vm3764, %v3657, %v3787
    %v3789 = vsel %vm3766, %v3658, %v3788
    %v3790 = vsel %vm3768, %v3659, %v3789
    %v3791 = vsel %vm3756, %v3661, %v3660
    %v3792 = vsel %vm3758, %v3662, %v3791
    %v3793 = vsel %vm3760, %v3663, %v3792
    %v3794 = vsel %vm3762, %v3664, %v3793
    %v3795 = vsel %vm3764, %v3665, %v3794
    %v3796 = vsel %vm3766, %v3666, %v3795
    %v3797 = vsel %vm3768, %v3667, %v3796
    %v3798 = vsel %vm3756, %v3669, %v3668
    %v3799 = vsel %vm3758, %v3670, %v3798
    %v3800 = vsel %vm3760, %v3671, %v3799
    %v3801 = vsel %vm3762, %v3672, %v3800
    %v3802 = vsel %vm3764, %v3673, %v3801
    %v3803 = vsel %vm3766, %v3674, %v3802
    %v3804 = vsel %vm3768, %v3675, %v3803
    %v3805 = vsel %vm3756, %v3677, %v3676
    %v3806 = vsel %vm3758, %v3678, %v3805
    %v3807 = vsel %vm3760, %v3679, %v3806
    %v3808 = vsel %vm3762, %v3680, %v3807
    %v3809 = vsel %vm3764, %v3681, %v3808
    %v3810 = vsel %vm3766, %v3682, %v3809
    %v3811 = vsel %vm3768, %v3683, %v3810
    %v3812 = vsel %vm3756, %v3685, %v3684
    %v3813 = vsel %vm3758, %v3686, %v3812
    %v3814 = vsel %vm3760, %v3687, %v3813
    %v3815 = vsel %vm3762, %v3688, %v3814
    %v3816 = vsel %vm3764, %v3689, %v3815
    %v3817 = vsel %vm3766, %v3690, %v3816
    %v3818 = vsel %vm3768, %v3691, %v3817
    %v3819 = vsel %vm3756, %v3693, %v3692
    %v3820 = vsel %vm3758, %v3694, %v3819
    %v3821 = vsel %vm3760, %v3695, %v3820
    %v3822 = vsel %vm3762, %v3696, %v3821
    %v3823 = vsel %vm3764, %v3697, %v3822
    %v3824 = vsel %vm3766, %v3698, %v3823
    %v3825 = vsel %vm3768, %v3699, %v3824
    %v3826 = vsel %vm3756, %v3701, %v3700
    %v3827 = vsel %vm3758, %v3702, %v3826
    %v3828 = vsel %vm3760, %v3703, %v3827
    %v3829 = vsel %vm3762, %v3704, %v3828
    %v3830 = vsel %vm3764, %v3705, %v3829
    %v3831 = vsel %vm3766, %v3706, %v3830
    %v3832 = vsel %vm3768, %v3707, %v3831
    %v3833 = vsel %vm3756, %v3709, %v3708
    %v3834 = vsel %vm3758, %v3710, %v3833
    %v3835 = vsel %vm3760, %v3711, %v3834
    %v3836 = vsel %vm3762, %v3712, %v3835
    %v3837 = vsel %vm3764, %v3713, %v3836
    %v3838 = vsel %vm3766, %v3714, %v3837
    %v3839 = vsel %vm3768, %v3715, %v3838
    %v3840 = vsel %vm3756, %v3717, %v3716
    %v3841 = vsel %vm3758, %v3718, %v3840
    %v3842 = vsel %vm3760, %v3719, %v3841
    %v3843 = vsel %vm3762, %v3720, %v3842
    %v3844 = vsel %vm3764, %v3721, %v3843
    %v3845 = vsel %vm3766, %v3722, %v3844
    %v3846 = vsel %vm3768, %v3723, %v3845
    %v3847 = vsel %vm3756, %v3725, %v3724
    %v3848 = vsel %vm3758, %v3726, %v3847
    %v3849 = vsel %vm3760, %v3727, %v3848
    %v3850 = vsel %vm3762, %v3728, %v3849
    %v3851 = vsel %vm3764, %v3729, %v3850
    %v3852 = vsel %vm3766, %v3730, %v3851
    %v3853 = vsel %vm3768, %v3731, %v3852
    %v3854 = vsel %vm3756, %v3733, %v3732
    %v3855 = vsel %vm3758, %v3734, %v3854
    %v3856 = vsel %vm3760, %v3735, %v3855
    %v3857 = vsel %vm3762, %v3736, %v3856
    %v3858 = vsel %vm3764, %v3737, %v3857
    %v3859 = vsel %vm3766, %v3738, %v3858
    %v3860 = vsel %vm3768, %v3739, %v3859
    %v3861 = vsel %vm3756, %v3741, %v3740
    %v3862 = vsel %vm3758, %v3742, %v3861
    %v3863 = vsel %vm3760, %v3743, %v3862
    %v3864 = vsel %vm3762, %v3744, %v3863
    %v3865 = vsel %vm3764, %v3745, %v3864
    %v3866 = vsel %vm3766, %v3746, %v3865
    %v3867 = vsel %vm3768, %v3747, %v3866
    %v3868 = vsel %vm3756, %v3749, %v3748
    %v3869 = vsel %vm3758, %v3750, %v3868
    %v3870 = vsel %vm3760, %v3751, %v3869
    %v3871 = vsel %vm3762, %v3752, %v3870
    %v3872 = vsel %vm3764, %v3753, %v3871
    %v3873 = vsel %vm3766, %v3754, %v3872
    %v3874 = vsel %vm3768, %v3755, %v3873
    %3891 = vxpose.xlu0.b32.start [1/16] %v3769, 128
    %3892 = vxpose.xlu0.b32.cont [2/16] %v3776, 128
    %3893 = vxpose.xlu0.b32.cont [3/16] %v3783, 128
    %3894 = vxpose.xlu0.b32.cont [4/16] %v3790, 128
    %3895 = vxpose.xlu0.b32.cont [5/16] %v3797, 128
    %3896 = vxpose.xlu0.b32.cont [6/16] %v3804, 128
    %3897 = vxpose.xlu0.b32.cont [7/16] %v3811, 128
    %3898 = vxpose.xlu0.b32.cont [8/16] %v3818, 128
    %3899 = vxpose.xlu0.b32.cont [9/16] %v3825, 128
    %3900 = vxpose.xlu0.b32.cont [10/16] %v3832, 128
    %3901 = vxpose.xlu0.b32.cont [11/16] %v3839, 128
    %3902 = vxpose.xlu0.b32.cont [12/16] %v3846, 128
    %3903 = vxpose.xlu0.b32.cont [13/16] %v3853, 128
    %3904 = vxpose.xlu0.b32.cont [14/16] %v3860, 128
    %3905 = vxpose.xlu0.b32.cont [15/16] %v3867, 128
    %3906 = vxpose.xlu0.b32.end [16/16] %v3874, 128
    %v3907 = vpop.trf.xlu0
    %v3908 = vpop.trf.xlu0
    %v3909 = vpop.trf.xlu0
    %v3910 = vpop.trf.xlu0
    %v3911 = vpop.trf.xlu0
    %v3912 = vpop.trf.xlu0
    %v3913 = vpop.trf.xlu0
    %v3914 = vpop.trf.xlu0
    %v3915 = vpop.trf.xlu0
    %v3916 = vpop.trf.xlu0
    %v3917 = vpop.trf.xlu0
    %v3918 = vpop.trf.xlu0
    %v3919 = vpop.trf.xlu0
    %v3920 = vpop.trf.xlu0
    %v3921 = vpop.trf.xlu0
    %v3922 = vpop.trf.xlu0
    %3923 = vst [vmem:[#allocation5] sm:$0xff] %v3907
    // Predicated region
    $region22: #{_score_pallas.1} parent=1 // pred_check
      _
    $region23: #{_score_pallas.1} parent=1 // pred_check_branch
      %3925 = sbr.rel (0) target = $region25
    $region24: #{_score_pallas.1} parent=1 // pred_region
      %3927 = vsyncadd [#allocation4], 0
      %s3929 = sshll.u32 [#allocation5], 4
      %s3930 = int_to_ptr.vmem [resolvable:$true] %s3929
      %s3931 = sshll.u32 %s4, 4
      %s3932 = int_to_ptr.hbm [resolvable:$true] %s3931
      %3934 = dma.vmem_to_hbm [thread:$0]  %s3930, 128, %s3932, [#allocation4]
    $region25: #{_score_pallas.1} parent=1 // pred_fallthru
      _
    // Predicated region
    $region26: #{_score_pallas.1} parent=1 // pred_check
      _
    $region27: #{_score_pallas.1} parent=1 // pred_check_branch
      %3936 = sbr.rel (0) target = $region29
    $region28: #{_score_pallas.1} parent=1 // pred_region
      %3938 = dma.done [#allocation4], 128
    $region29: #{_score_pallas.1} parent=1 // pred_fallthru
      _
    %3939 = vsyncpa [#allocation3], 1
    %3940 = vsyncpa [#allocation4], 1

</llo_original>
